<compile_context>
chip_gen: v6e
topology: v6e:2x2x1
jax: 0.10.0
libtpu: 0.0.40
codegen_flags: <defaults>
</compile_context>

<pallas_src>
import functools
import numpy as np
import jax
import jax.numpy as jnp
from jax import lax
from jax.experimental import pallas as pl
from jax.experimental.pallas import tpu as pltpu

EMBEDDING_DIM = 50
HIDDEN_DIM_LST = [50, 50, 50, 50]

FEAT_PAD = 128     # padded feature width (lane-dense)
TILE_M = 256       # A_hat row tile
TILE_K = 512       # A_hat reduction tile (TILE_M divides TILE_K)


def _round_up(x, m):
    return ((x + m - 1) // m) * m


def build_a_hat(graph):
    """Mirror of GCN.get_A_hat (host-side numpy glue)."""
    n = len(graph)
    A = np.zeros((n, n), dtype=np.float32)
    D = np.zeros((n, n), dtype=np.float32)
    for i in graph:
        A[i, i] = 1.0
        D[i, i] = 1.0
        for neighbor_tup in graph[i]:
            A[i, neighbor_tup[0]] += 1.0
            D[i, i] += 1.0
        D[i, i] = 1.0 / np.sqrt(D[i, i])
    return (D @ A @ D).astype(np.float32)


# --------------------------------------------------------------------------
# Kernels
# --------------------------------------------------------------------------
def _gru_kernel(x_ref, wg_ref, bg_ref, h_ref, *, hp):
    # One fused gate matmul (r|z|n) instead of three tiny ones.
    gates = jnp.dot(x_ref[...], wg_ref[...], preferred_element_type=jnp.float32)
    r = jax.nn.sigmoid(gates[:, 0:hp] + bg_ref[0:1, :])          # b_ir + b_hr folded
    z = jax.nn.sigmoid(gates[:, hp:2 * hp] + bg_ref[1:2, :])     # b_iz + b_hz folded
    n = jnp.tanh(gates[:, 2 * hp:3 * hp] + bg_ref[2:3, :] + r * bg_ref[3:4, :])
    h_ref[...] = ((1.0 - z) * n).astype(h_ref.dtype)             # h_prev = 0


def _gcn_layer_kernel(a_ref, h_ref, w_ref, b_ref, o_ref, acc_ref, *,
                      is_last, out_dim):
    k = pl.program_id(1)

    @pl.when(k == 0)
    def _():
        acc_ref[...] = jnp.zeros_like(acc_ref)

    # bf16 x bf16 -> f32 accumulation of (A_hat row-tile @ h K-tile).
    acc_ref[...] += jnp.dot(a_ref[...], h_ref[...],
                            preferred_element_type=jnp.float32)

    @pl.when(k == pl.num_programs(1) - 1)
    def _():
        z = jnp.dot(acc_ref[...], w_ref[...],
                    preferred_element_type=jnp.float32) + b_ref[...]
        if is_last:
            # Row softmax over the first `out_dim` valid lanes; padded lanes -> 0.
            col = lax.broadcasted_iota(jnp.int32, z.shape, 1)
            z = jnp.where(col < out_dim, z, -1e30)
            m = jnp.max(z, axis=1, keepdims=True)
            e = jnp.exp(z - m)
            denom = jnp.sum(e, axis=1, keepdims=True)
            o_ref[...] = (e * pl.reciprocal(denom, approx=True)).astype(o_ref.dtype)
        else:
            o_ref[...] = jnp.maximum(z, 0.0).astype(o_ref.dtype)


# --------------------------------------------------------------------------
# Pallas-call wrappers
# --------------------------------------------------------------------------
def _gru_embed(x_pad, w_gates, b_gates, hp):
    npad, od = x_pad.shape
    return pl.pallas_call(
        functools.partial(_gru_kernel, hp=hp),
        out_shape=jax.ShapeDtypeStruct((npad, hp), jnp.bfloat16),
        grid_spec=pltpu.PrefetchScalarGridSpec(
            num_scalar_prefetch=0,
            grid=(npad // TILE_M,),
            in_specs=[
                pl.BlockSpec((TILE_M, od), lambda i: (i, 0)),
                pl.BlockSpec((od, 3 * hp), lambda i: (0, 0)),
                pl.BlockSpec((4, hp), lambda i: (0, 0)),
            ],
            out_specs=pl.BlockSpec((TILE_M, hp), lambda i: (i, 0)),
        ),
        compiler_params=pltpu.CompilerParams(dimension_semantics=("parallel",)),
    )(x_pad, w_gates, b_gates)


def _gcn_layer(a_pad_bf16, h_bf16, w, b, *, is_last, out_dim):
    npad, hp = h_bf16.shape
    out_dtype = jnp.float32 if is_last else jnp.bfloat16
    return pl.pallas_call(
        functools.partial(_gcn_layer_kernel, is_last=is_last, out_dim=out_dim),
        out_shape=jax.ShapeDtypeStruct((npad, hp), out_dtype),
        grid_spec=pltpu.PrefetchScalarGridSpec(
            num_scalar_prefetch=0,
            grid=(npad // TILE_M, npad // TILE_K),
            in_specs=[
                pl.BlockSpec((TILE_M, TILE_K), lambda i, k: (i, k)),   # A_hat tile
                pl.BlockSpec((TILE_K, hp), lambda i, k: (k, 0)),       # h K-tile
                pl.BlockSpec((hp, hp), lambda i, k: (0, 0)),           # resident W
                pl.BlockSpec((1, hp), lambda i, k: (0, 0)),            # resident b
            ],
            out_specs=pl.BlockSpec((TILE_M, hp), lambda i, k: (i, 0)),
            scratch_shapes=[pltpu.VMEM((TILE_M, hp), jnp.float32)],
        ),
        compiler_params=pltpu.CompilerParams(
            dimension_semantics=("parallel", "arbitrary")),
    )(a_pad_bf16, h_bf16, w, b)


def gcn_forward(a_hat, x, packed):
    """Full GCN forward.  `packed` comes from pack_params()."""
    n, out_dim = x.shape
    hp = FEAT_PAD
    npad = _round_up(max(n, 1), TILE_K)

    # Pad nodes to the tile multiple; cast A_hat to bf16 for the MXU.
    a_pad = jnp.zeros((npad, npad), jnp.bfloat16).at[:n, :n].set(
        a_hat.astype(jnp.bfloat16))
    x_pad = jnp.zeros((npad, out_dim), jnp.float32).at[:n, :].set(x)

    w_gates, b_gates, layer_ws, layer_bs = packed

    h = _gru_embed(x_pad, w_gates, b_gates, hp)
    n_layers = len(layer_ws)
    for li in range(n_layers):
        h = _gcn_layer(a_pad, h, layer_ws[li], layer_bs[li],
                       is_last=(li == n_layers - 1), out_dim=out_dim)
    return h[:n, :out_dim]


# --------------------------------------------------------------------------
# Parameter construction (PyTorch-shaped raw params -> fused/padded kernel params)
# --------------------------------------------------------------------------
def init_raw_params(key, output_dim):
    """Synthetic params in the PyTorch module's shapes."""
    H = EMBEDDING_DIM
    keys = jax.random.split(key, 9)
    s = 1.0 / np.sqrt(H)

    def uni(k, shape, bound):
        return jax.random.uniform(k, shape, jnp.float32, minval=-bound, maxval=bound)

    raw = {
        "gru_w_ih": uni(keys[0], (3 * H, output_dim), s),   # (r|z|n) x out_dim
        "gru_b_ih": uni(keys[1], (3 * H,), s),
        "gru_b_hh": uni(keys[2], (3 * H,), s),
        "linears": [],
    }
    dims = [EMBEDDING_DIM] + HIDDEN_DIM_LST + [output_dim]
    for li in range(5):
        fan_in, fan_out = dims[li], dims[li + 1]
        bound = 1.0 / np.sqrt(fan_in)
        kw, kb = jax.random.split(keys[4 + li])
        raw["linears"].append((uni(kw, (fan_out, fan_in), bound),
                               uni(kb, (fan_out,), bound)))
    return raw


def pack_params(raw, output_dim, hp=FEAT_PAD):
    """Fuse GRU gates, fold zero-hidden biases, pad all feature dims to 128."""
    H = EMBEDDING_DIM
    w_ih = np.asarray(raw["gru_w_ih"])
    b_ih = np.asarray(raw["gru_b_ih"])
    b_hh = np.asarray(raw["gru_b_hh"])
    w_ir, w_iz, w_in = w_ih[0:H], w_ih[H:2 * H], w_ih[2 * H:3 * H]
    b_ir, b_iz, b_in = b_ih[0:H], b_ih[H:2 * H], b_ih[2 * H:3 * H]
    b_hr, b_hz, b_hn = b_hh[0:H], b_hh[H:2 * H], b_hh[2 * H:3 * H]

    # Fused gate weight: [out_dim, 3*hp], one 128-lane slot per gate.
    w_gates = np.zeros((output_dim, 3 * hp), np.float32)
    w_gates[:, 0 * hp:0 * hp + H] = w_ir.T
    w_gates[:, 1 * hp:1 * hp + H] = w_iz.T
    w_gates[:, 2 * hp:2 * hp + H] = w_in.T

    # Concatenated biases; b_ir+b_hr and b_iz+b_hz folded (exact since h0 = 0).
    b_gates = np.zeros((4, hp), np.float32)
    b_gates[0, :H] = b_ir + b_hr
    b_gates[1, :H] = b_iz + b_hz
    b_gates[2, :H] = b_in
    b_gates[3, :H] = b_hn

    layer_ws, layer_bs = [], []
    for w, b in raw["linears"]:
        w = np.asarray(w)
        b = np.asarray(b)
        fan_out, fan_in = w.shape
        wp = np.zeros((hp, hp), np.float32)
        wp[:fan_in, :fan_out] = w.T
        bp = np.zeros((1, hp), np.float32)
        bp[0, :fan_out] = b
        layer_ws.append(jnp.asarray(wp))
        layer_bs.append(jnp.asarray(bp))

    return (jnp.asarray(w_gates), jnp.asarray(b_gates),
            tuple(layer_ws), tuple(layer_bs))


if __name__ == "__main__":
    key = jax.random.PRNGKey(0)
    k_param, k_x = jax.random.split(key)

    N = 8                 # number of graph nodes
    output_dim = 3        # model != 'SIS'  ->  3 states

    # Simple ring graph: node i connected to (i-1, i+1) mod N.
    graph = {i: [((i - 1) % N,), ((i + 1) % N,)] for i in range(N)}
    a_hat = jnp.asarray(build_a_hat(graph))

    raw = init_raw_params(k_param, output_dim)
    packed = pack_params(raw, output_dim)
    x = jax.random.normal(k_x, (N, output_dim), dtype=jnp.float32)

    out = jax.block_until_ready(gcn_forward(a_hat, x, packed))

    assert out.shape == (N, output_dim)
    assert bool(jnp.all(jnp.isfinite(out)))
    # Softmax rows sum to 1 (tolerance loosened for bf16 matmuls + EUP
    # approximate reciprocal in the softmax denominator).
    assert bool(jnp.allclose(jnp.sum(out, axis=1), 1.0, atol=5e-3))
    print("KERNEL_OK")
</pallas_src>

<mosaic_0001>
module attributes {stable_mosaic.version = 11 : i64} {
  func.func @_gru_kernel(%arg0: i32, %arg1: memref<256x3xf32, #tpu.memory_space<vmem>>, %arg2: memref<3x384xf32, #tpu.memory_space<vmem>>, %arg3: memref<4x128xf32, #tpu.memory_space<vmem>>, %arg4: memref<256x128xbf16, #tpu.memory_space<vmem>>) attributes {dimension_semantics = [#tpu.dimension_semantics<parallel>], iteration_bounds = array<i64: 2>, scalar_prefetch = 0 : i64, scratch_operands = 0 : i64, tpu.core_type = #tpu.core_type<tc>, window_params = [{transform_indices = @transform_0, window_bounds = array<i64: 256, 3>}, {pipeline_mode = #tpu.pipeline_mode<synchronous>, transform_indices = @transform_1, window_bounds = array<i64: 3, 384>}, {pipeline_mode = #tpu.pipeline_mode<synchronous>, transform_indices = @transform_2, window_bounds = array<i64: 4, 128>}, {transform_indices = @transform_3, window_bounds = array<i64: 256, 128>}]} {
    %c0 = arith.constant 0 : index
    %c0_0 = arith.constant 0 : index
    %0 = vector.load %arg1[%c0, %c0_0] : memref<256x3xf32, #tpu.memory_space<vmem>>, vector<256x3xf32>
    %c0_1 = arith.constant 0 : index
    %c0_2 = arith.constant 0 : index
    %1 = vector.load %arg2[%c0_1, %c0_2] : memref<3x384xf32, #tpu.memory_space<vmem>>, vector<3x384xf32>
    %cst = arith.constant dense<0.000000e+00> : vector<256x384xf32>
    %2 = tpu.matmul %0, %1, %cst {dimension_numbers = #tpu.dot_dimension_numbers<[1], [0], [0], [1], [0, 0, 1, 1], [], []>} : vector<256x3xf32>, vector<3x384xf32>, vector<256x384xf32> -> vector<256x384xf32>
    %3 = vector.extract_strided_slice %2 {offsets = [0, 0], sizes = [256, 128], strides = [1, 1]} : vector<256x384xf32> to vector<256x128xf32>
    %c0_3 = arith.constant 0 : index
    %c0_4 = arith.constant 0 : index
    %4 = vector.load %arg3[%c0_3, %c0_4] : memref<4x128xf32, #tpu.memory_space<vmem>>, vector<1x128xf32>
    %5 = vector.broadcast %4 : vector<1x128xf32> to vector<256x128xf32>
    %6 = arith.addf %3, %5 : vector<256x128xf32>
    %7 = arith.negf %6 : vector<256x128xf32>
    %8 = math.exp %7 : vector<256x128xf32>
    %cst_5 = arith.constant 1.000000e+00 : f32
    %9 = vector.broadcast %cst_5 : f32 to vector<256x128xf32>
    %10 = arith.addf %9, %8 : vector<256x128xf32>
    %11 = arith.divf %9, %10 : vector<256x128xf32>
    %12 = vector.extract_strided_slice %2 {offsets = [0, 128], sizes = [256, 128], strides = [1, 1]} : vector<256x384xf32> to vector<256x128xf32>
    %c1 = arith.constant 1 : index
    %c0_6 = arith.constant 0 : index
    %13 = vector.load %arg3[%c1, %c0_6] : memref<4x128xf32, #tpu.memory_space<vmem>>, vector<1x128xf32>
    %14 = vector.broadcast %13 : vector<1x128xf32> to vector<256x128xf32>
    %15 = arith.addf %12, %14 : vector<256x128xf32>
    %16 = arith.negf %15 : vector<256x128xf32>
    %17 = math.exp %16 : vector<256x128xf32>
    %cst_7 = arith.constant 1.000000e+00 : f32
    %18 = vector.broadcast %cst_7 : f32 to vector<256x128xf32>
    %19 = arith.addf %18, %17 : vector<256x128xf32>
    %20 = arith.divf %18, %19 : vector<256x128xf32>
    %21 = vector.extract_strided_slice %2 {offsets = [0, 256], sizes = [256, 128], strides = [1, 1]} : vector<256x384xf32> to vector<256x128xf32>
    %c2 = arith.constant 2 : index
    %c0_8 = arith.constant 0 : index
    %22 = vector.load %arg3[%c2, %c0_8] : memref<4x128xf32, #tpu.memory_space<vmem>>, vector<1x128xf32>
    %23 = vector.broadcast %22 : vector<1x128xf32> to vector<256x128xf32>
    %24 = arith.addf %21, %23 : vector<256x128xf32>
    %c3 = arith.constant 3 : index
    %c0_9 = arith.constant 0 : index
    %25 = vector.load %arg3[%c3, %c0_9] : memref<4x128xf32, #tpu.memory_space<vmem>>, vector<1x128xf32>
    %26 = vector.broadcast %25 : vector<1x128xf32> to vector<256x128xf32>
    %27 = arith.mulf %11, %26 : vector<256x128xf32>
    %28 = arith.addf %24, %27 : vector<256x128xf32>
    %29 = math.tanh %28 : vector<256x128xf32>
    %cst_10 = arith.constant 1.000000e+00 : f32
    %30 = vector.broadcast %cst_10 : f32 to vector<256x128xf32>
    %31 = arith.subf %30, %20 : vector<256x128xf32>
    %32 = arith.mulf %31, %29 : vector<256x128xf32>
    %33 = arith.truncf %32 : vector<256x128xf32> to vector<256x128xbf16>
    %c0_11 = arith.constant 0 : index
    %c0_12 = arith.constant 0 : index
    %34 = vector.load %arg4[%c0_11, %c0_12] : memref<256x128xbf16, #tpu.memory_space<vmem>>, vector<256x128xbf16>
    tpu.vector_store %arg4[%c0_11, %c0_12], %33 {strides = array<i32>} : memref<256x128xbf16, #tpu.memory_space<vmem>>, vector<256x128xbf16>,
    return
  }
  func.func @transform_0(%arg0: i32) -> (i32, i32) {
    %c0_i32 = arith.constant 0 : i32
    %c0_i32_0 = arith.constant 0 : i32
    return %arg0, %c0_i32 : i32, i32
  }
  func.func @transform_1(%arg0: i32) -> (i32, i32) {
    %c0_i32 = arith.constant 0 : i32
    %c0_i32_0 = arith.constant 0 : i32
    %c0_i32_1 = arith.constant 0 : i32
    return %c0_i32, %c0_i32_0 : i32, i32
  }
  func.func @transform_2(%arg0: i32) -> (i32, i32) {
    %c0_i32 = arith.constant 0 : i32
    %c0_i32_0 = arith.constant 0 : i32
    %c0_i32_1 = arith.constant 0 : i32
    return %c0_i32, %c0_i32_0 : i32, i32
  }
  func.func @transform_3(%arg0: i32) -> (i32, i32) {
    %c0_i32 = arith.constant 0 : i32
    %c0_i32_0 = arith.constant 0 : i32
    return %arg0, %c0_i32 : i32, i32
  }
}

</mosaic_0001>

<llo_original>
// kernel: tpu_custom_call.1
$region0: #{tpu_custom_call.1}
  #allocation0 [shape = 'u32[]', space=smem, size = 0x4, offset = 0x4, fixed_abs, tag = 'smem constant byte address 0x4 - core index']
  #allocation1 [shape = 'u32[144,128]{1,0:T(1,128)}', space=vmem, size = 0x12000, scoped, tag = 'internal scratch']
  %s0 = inlined_call_operand.vmem [shape: f32[512,3], index: 0, kind: input, shape index: {}]
  %s1 = inlined_call_operand.vmem [shape: f32[3,384], index: 1, kind: input, shape index: {}]
  %s2 = inlined_call_operand.vmem [shape: f32[4,128], index: 2, kind: input, shape index: {}]
  %s3 = inlined_call_operand.hbm [shape: bf16[512,128], index: 3, kind: output, shape index: {}]
  %s4 = sld [smem:[#allocation0]]
  $region45: #{tpu_custom_call.1} parent=0
    _
  %s6 = ssub.s32 1, %s4
  %s7 = scalar_select 0, %s6, %s4
  $region1: #{tpu_custom_call.1} parent=0
    #allocation2 [shape = 'u8[131072]{0}', space=vmem, size = 0x20000, scoped, tag = 'output window, operand 0']
    #allocation3 [shape = 's32[2]{0}', space=sflag, size = 0x8, scoped, tag = 'scoped memory for tpu_custom_call.1']
    %8 = vsyncpa [#allocation3], 0
    %s9 = scalar_lea.sflag [#allocation3], 1
    %10 = vsyncpa %s9, 0
    loop: start=0, step=1, limit=4
    $region2: #{tpu_custom_call.1} parent=1 // loop_pre_header
      _
    $region3: #{tpu_custom_call.1} parent=1 // loop_header
      %s12 = sphi 0, %s16
      %p13 = scmp.ge.s32.totalorder %s12, 4
      %s22 = sphi 0, %s24
      %s25 = sphi 0, %s22
      %s26 = sphi 0, %s25
      %s42 = sphi 0, %s26
      %s46 = sphi 0, %s46
      %s48 = sphi 0, %s46
      %s49 = sphi 0, %s48
      %s63 = sphi 0, %s49
      %s67 = sphi 0, %s67
      %s69 = sphi 0, %s67
      %s70 = sphi 0, %s69
      %s84 = sphi 0, %s70
      %s90 = sphi 0, %s92
      %s93 = sphi 0, %s90
      %s94 = sphi 0, %s93
      %s110 = sphi 0, %s94
    $region4: #{tpu_custom_call.1} parent=1 // loop_header_branch
      %15 = sbr.rel (%p13) target = $region8
    $region5: #{tpu_custom_call.1} parent=1 // loop_body
      %s17 = ssub.s32 %s12, 1
      %s18 = ssub.s32 %s12, 2
      %s19 = sadd.s32 %s12, 1
      %s20 = ssub.s32 %s12, %s19
      %p21 = scmp.eq.s32.totalorder %s20, 0
      %s23 = sadd.s32 %s22, 1
      %s24 = scalar_select %p21, %s22, %s23
      %p27 = pneg %p21
      %p28 = scmp.eq.s32.totalorder %s12, 1
      %p29 = por %p27, %p28
      %p30 = scmp.ne.s32.totalorder %s22, %s25
      %p31 = scmp.eq.s32.totalorder %s12, 0
      %p32 = por %p30, %p31
      %p33 = scmp.ne.s32.totalorder %s22, %s25
      %p34 = scmp.eq.s32.totalorder %s17, 1
      %p35 = por %p33, %p34
      %p36 = scmp.ne.s32.totalorder %s25, %s26
      %p37 = scmp.eq.s32.totalorder %s17, 0
      %p38 = por %p36, %p37
      %p39 = scmp.ne.s32.totalorder %s25, %s26
      %p40 = scmp.eq.s32.totalorder %s18, 1
      %p41 = por %p39, %p40
      %p43 = scmp.ne.s32.totalorder %s26, %s42
      %p44 = scmp.eq.s32.totalorder %s18, 0
      %p45 = por %p43, %p44
      %s47 = sadd.s32 %s46, 1
      %p50 = scmp.eq.s32.totalorder %s12, 1
      %p51 = scmp.ne.s32.totalorder %s46, %s48
      %p52 = scmp.eq.s32.totalorder %s12, 0
      %p53 = por %p51, %p52
      %p54 = scmp.ne.s32.totalorder %s46, %s48
      %p55 = scmp.eq.s32.totalorder %s17, 1
      %p56 = por %p54, %p55
      %p57 = scmp.ne.s32.totalorder %s48, %s49
      %p58 = scmp.eq.s32.totalorder %s17, 0
      %p59 = por %p57, %p58
      %p60 = scmp.ne.s32.totalorder %s48, %s49
      %p61 = scmp.eq.s32.totalorder %s18, 1
      %p62 = por %p60, %p61
      %p64 = scmp.ne.s32.totalorder %s49, %s63
      %p65 = scmp.eq.s32.totalorder %s18, 0
      %p66 = por %p64, %p65
      %s68 = sadd.s32 %s67, 1
      %p71 = scmp.eq.s32.totalorder %s12, 1
      %p72 = scmp.ne.s32.totalorder %s67, %s69
      %p73 = scmp.eq.s32.totalorder %s12, 0
      %p74 = por %p72, %p73
      %p75 = scmp.ne.s32.totalorder %s67, %s69
      %p76 = scmp.eq.s32.totalorder %s17, 1
      %p77 = por %p75, %p76
      %p78 = scmp.ne.s32.totalorder %s69, %s70
      %p79 = scmp.eq.s32.totalorder %s17, 0
      %p80 = por %p78, %p79
      %p81 = scmp.ne.s32.totalorder %s69, %s70
      %p82 = scmp.eq.s32.totalorder %s18, 1
      %p83 = por %p81, %p82
      %p85 = scmp.ne.s32.totalorder %s70, %s84
      %p86 = scmp.eq.s32.totalorder %s18, 0
      %p87 = por %p85, %p86
      %s88 = ssub.s32 %s12, %s19
      %p89 = scmp.eq.s32.totalorder %s88, 0
      %s91 = sadd.s32 %s90, 1
      %s92 = scalar_select %p89, %s90, %s91
      %p95 = pneg %p89
      %p96 = scmp.eq.s32.totalorder %s12, 1
      %p97 = por %p95, %p96
      %p98 = scmp.ne.s32.totalorder %s90, %s93
      %p99 = scmp.eq.s32.totalorder %s12, 0
      %p100 = por %p98, %p99
      %p101 = scmp.ne.s32.totalorder %s90, %s93
      %p102 = scmp.eq.s32.totalorder %s17, 1
      %p103 = por %p101, %p102
      %p104 = scmp.ne.s32.totalorder %s93, %s94
      %p105 = scmp.eq.s32.totalorder %s17, 0
      %p106 = por %p104, %p105
      %p107 = scmp.ne.s32.totalorder %s93, %s94
      %p108 = scmp.eq.s32.totalorder %s18, 1
      %p109 = por %p107, %p108
      %p111 = scmp.ne.s32.totalorder %s94, %s110
      %p112 = scmp.eq.s32.totalorder %s18, 0
      %p113 = por %p111, %p112
      %p114 = scmp.le.s32.totalorder 1, %s12
      %p115 = scmp.lt.s32.totalorder %s12, 3
      %p116 = pnand %p114, %p115
      %p117 = pneg %p116
      // Predicated region
      $region9: #{tpu_custom_call.1} parent=5 // pred_check
        _
      $region10: #{tpu_custom_call.1} parent=5 // pred_check_branch
        %119 = sbr.rel (%p116) target = $region12
      $region11: #{tpu_custom_call.1} parent=5 // pred_region
        %s120 = ssub.s32 %s12, 1
        // Predicated region
        $region13: #{tpu_custom_call.1} parent=11 // pred_check
          %p121 = pneg %p59
        $region14: #{tpu_custom_call.1} parent=11 // pred_check_branch
          %123 = sbr.rel (%p121) target = $region16
        $region15: #{tpu_custom_call.1} parent=11 // pred_region
          _
        $region16: #{tpu_custom_call.1} parent=11 // pred_fallthru
          _
        // Predicated region
        $region17: #{tpu_custom_call.1} parent=11 // pred_check
          %p124 = pneg %p80
        $region18: #{tpu_custom_call.1} parent=11 // pred_check_branch
          %126 = sbr.rel (%p124) target = $region20
        $region19: #{tpu_custom_call.1} parent=11 // pred_region
          _
        $region20: #{tpu_custom_call.1} parent=11 // pred_fallthru
          _
      $region12: #{tpu_custom_call.1} parent=5 // pred_fallthru
        _
      %p127 = scmp.lt.s32.totalorder %s12, 2
      // Predicated region
      $region21: #{tpu_custom_call.1} parent=5 // pred_check
        %p128 = pneg %p127
      $region22: #{tpu_custom_call.1} parent=5 // pred_check_branch
        %130 = sbr.rel (%p128) target = $region24
      $region23: #{tpu_custom_call.1} parent=5 // pred_region
        // Predicated region
        $region25: #{tpu_custom_call.1} parent=23 // pred_check
          %p131 = pneg %p32
        $region26: #{tpu_custom_call.1} parent=23 // pred_check_branch
          %133 = sbr.rel (%p131) target = $region28
        $region27: #{tpu_custom_call.1} parent=23 // pred_region
          %s134 = smul.u32 32, %s12
          %p135 = scmp.lt.s32.totalorder %s134, 63
          %s136 = scalar_select %p135, %s134, 63
          %s137 = smul.addr %s136, 8
          %s138 = scalar_lea.vmem %s0, %s137
          %s139 = smul.u32 32, %s12
        $region28: #{tpu_custom_call.1} parent=23 // pred_fallthru
          _
      $region24: #{tpu_custom_call.1} parent=5 // pred_fallthru
        _
      %p140 = scmp.le.s32.totalorder 1, %s12
      %p141 = scmp.lt.s32.totalorder %s12, 3
      %p142 = pnand %p140, %p141
      %p143 = pneg %p142
      // Predicated region
      $region29: #{tpu_custom_call.1} parent=5 // pred_check
        _
      $region30: #{tpu_custom_call.1} parent=5 // pred_check_branch
        %145 = sbr.rel (%p142) target = $region32
      $region31: #{tpu_custom_call.1} parent=5 // pred_region
        %s146 = ssub.s32 %s12, 1
        %s147 = smul.u32 32, %s17
        %p148 = scmp.lt.s32.totalorder %s147, 63
        %s149 = scalar_select %p148, %s147, 63
        %s150 = smul.addr %s149, 8
        %s151 = scalar_lea.vmem %s0, %s150
        %p152 = pneg %p38
        %p153 = pneg %p35
        %p154 = pneg %p59
        %p155 = pneg %p56
        %p156 = pneg %p80
        %p157 = pneg %p77
        %p158 = pneg %p106
        %p159 = pneg %p103
        %s160 = sand.u32 %s93, 1
        %s161 = scalar_lea.sflag [#allocation3], %s160
        %s162 = sand.u32 %s93, 1
        %s163 = smul.addr %s162, 128
        %s164 = scalar_lea.vmem [#allocation2], %s163
        %s165 = smul.u32 32, %s17
        %p166 = scmp.lt.s32.totalorder %s165, 63
        %s167 = scalar_select %p166, %s165, 63
        %s168 = smul.addr %s167, 8
        %s169 = scalar_lea.vmem %s0, %s168
        %s170 = smul.u32 32, %s17
        %s171 = smul.u32 32, %s17
        %v172 = vld [vmem:[%s169] sm:$0xff]
        %v173 = vld [vmem:[%s169 + $0x8] sm:$0xff]
        %v174 = vld [vmem:[%s169 + $0x10] sm:$0xff]
        %v175 = vld [vmem:[%s169 + $0x18] sm:$0xff]
        %v176 = vld [vmem:[%s169 + $0x20] sm:$0xff]
        %v177 = vld [vmem:[%s169 + $0x28] sm:$0xff]
        %v178 = vld [vmem:[%s169 + $0x30] sm:$0xff]
        %v179 = vld [vmem:[%s169 + $0x38] sm:$0xff]
        %v180 = vld [vmem:[%s169 + $0x40] sm:$0xff]
        %v181 = vld [vmem:[%s169 + $0x48] sm:$0xff]
        %v182 = vld [vmem:[%s169 + $0x50] sm:$0xff]
        %v183 = vld [vmem:[%s169 + $0x58] sm:$0xff]
        %v184 = vld [vmem:[%s169 + $0x60] sm:$0xff]
        %v185 = vld [vmem:[%s169 + $0x68] sm:$0xff]
        %v186 = vld [vmem:[%s169 + $0x70] sm:$0xff]
        %v187 = vld [vmem:[%s169 + $0x78] sm:$0xff]
        %v188 = vld [vmem:[%s169 + $0x80] sm:$0xff]
        %v189 = vld [vmem:[%s169 + $0x88] sm:$0xff]
        %v190 = vld [vmem:[%s169 + $0x90] sm:$0xff]
        %v191 = vld [vmem:[%s169 + $0x98] sm:$0xff]
        %v192 = vld [vmem:[%s169 + $0xa0] sm:$0xff]
        %v193 = vld [vmem:[%s169 + $0xa8] sm:$0xff]
        %v194 = vld [vmem:[%s169 + $0xb0] sm:$0xff]
        %v195 = vld [vmem:[%s169 + $0xb8] sm:$0xff]
        %v196 = vld [vmem:[%s169 + $0xc0] sm:$0xff]
        %v197 = vld [vmem:[%s169 + $0xc8] sm:$0xff]
        %v198 = vld [vmem:[%s169 + $0xd0] sm:$0xff]
        %v199 = vld [vmem:[%s169 + $0xd8] sm:$0xff]
        %v200 = vld [vmem:[%s169 + $0xe0] sm:$0xff]
        %v201 = vld [vmem:[%s169 + $0xe8] sm:$0xff]
        %v202 = vld [vmem:[%s169 + $0xf0] sm:$0xff]
        %v203 = vld [vmem:[%s169 + $0xf8] sm:$0xff]
        %v204 = vld [vmem:[%s1] sm:$0x77]
        %v205 = vld [vmem:[%s1 + $0x8] sm:$0x7]
        %v208 = vcombine.high %v204, %v204
        %vm209 = vcmask 23552
        %v211 = vsel %vm209, %v172, 0
        %v214 = vsel %vm209, %v173, 0
        %v217 = vsel %vm209, %v174, 0
        %v220 = vsel %vm209, %v175, 0
        %v223 = vsel %vm209, %v176, 0
        %v226 = vsel %vm209, %v177, 0
        %v229 = vsel %vm209, %v178, 0
        %v232 = vsel %vm209, %v179, 0
        %v235 = vsel %vm209, %v180, 0
        %v238 = vsel %vm209, %v181, 0
        %v241 = vsel %vm209, %v182, 0
        %v244 = vsel %vm209, %v183, 0
        %v247 = vsel %vm209, %v184, 0
        %v250 = vsel %vm209, %v185, 0
        %v253 = vsel %vm209, %v186, 0
        %v256 = vsel %vm209, %v187, 0
        %v259 = vsel %vm209, %v188, 0
        %v262 = vsel %vm209, %v189, 0
        %v265 = vsel %vm209, %v190, 0
        %v268 = vsel %vm209, %v191, 0
        %v271 = vsel %vm209, %v192, 0
        %v274 = vsel %vm209, %v193, 0
        %v277 = vsel %vm209, %v194, 0
        %v280 = vsel %vm209, %v195, 0
        %v283 = vsel %vm209, %v196, 0
        %v286 = vsel %vm209, %v197, 0
        %v289 = vsel %vm209, %v198, 0
        %v292 = vsel %vm209, %v199, 0
        %v295 = vsel %vm209, %v200, 0
        %v298 = vsel %vm209, %v201, 0
        %v301 = vsel %vm209, %v202, 0
        %v304 = vsel %vm209, %v203, 0
        %vm306 = vcmask 1042432
        %v307 = vsel %vm306, %v204, 0
        %v309 = vsel %vm306, %v208, 0
        %v311 = vsel %vm306, %v205, 0
        %313 = vmatprep.subr.mxu0 0.0
        %314 = vmatpush1.msra.mxu0 0.0
        %315 = vmatprep.subr.mxu0 0.0
        %316 = vmatpush1.msra.mxu0 0.0
        %317 = vmatprep.subr.mxu0 0.0
        %318 = vmatpush1.msra.mxu0 0.0
        %319 = vmatprep.subr.mxu0 0.0
        %320 = vmatpush1.msra.mxu0 0.0
        %321 = vmatprep.subr.mxu0 0.0
        %322 = vmatpush1.msra.mxu0 0.0
        %323 = vmatprep.subr.mxu0 0.0
        %324 = vmatpush1.msra.mxu0 0.0
        %325 = vmatprep.subr.mxu0 0.0
        %326 = vmatpush1.msra.mxu0 0.0
        %327 = vmatprep.subr.mxu0 0.0
        %328 = vmatpush1.msra.mxu0 0.0
        %329 = vmatprep.subr.mxu0 0.0
        %330 = vmatpush1.msra.mxu0 0.0
        %331 = vmatprep.subr.mxu0 0.0
        %332 = vmatpush1.msra.mxu0 0.0
        %333 = vmatprep.subr.mxu0 0.0
        %334 = vmatpush1.msra.mxu0 0.0
        %335 = vmatprep.subr.mxu0 0.0
        %336 = vmatpush1.msra.mxu0 0.0
        %337 = vmatprep.subr.mxu0 0.0
        %338 = vmatpush1.msra.mxu0 0.0
        %339 = vmatprep.subr.mxu0 0.0
        %340 = vmatpush1.msra.mxu0 0.0
        %341 = vmatprep.subr.mxu0 0.0
        %342 = vmatpush1.msra.mxu0 0.0
        %343 = vmatprep.subr.mxu0 %v309
        %344 = vmatpush1.msra.mxu0 %v307
        %345 = vmatprep.subr.mxu0 0.0
        %346 = vmatpush2.msra.mxu0 0.0
        %347 = vmatprep.subr.mxu0 0.0
        %348 = vmatpush2.msra.mxu0 0.0
        %349 = vmatprep.subr.mxu0 0.0
        %350 = vmatpush2.msra.mxu0 0.0
        %351 = vmatprep.subr.mxu0 0.0
        %352 = vmatpush2.msra.mxu0 0.0
        %353 = vmatprep.subr.mxu0 0.0
        %354 = vmatpush2.msra.mxu0 0.0
        %355 = vmatprep.subr.mxu0 0.0
        %356 = vmatpush2.msra.mxu0 0.0
        %357 = vmatprep.subr.mxu0 0.0
        %358 = vmatpush2.msra.mxu0 0.0
        %359 = vmatprep.subr.mxu0 0.0
        %360 = vmatpush2.msra.mxu0 0.0
        %361 = vmatprep.subr.mxu0 0.0
        %362 = vmatpush2.msra.mxu0 0.0
        %363 = vmatprep.subr.mxu0 0.0
        %364 = vmatpush2.msra.mxu0 0.0
        %365 = vmatprep.subr.mxu0 0.0
        %366 = vmatpush2.msra.mxu0 0.0
        %367 = vmatprep.subr.mxu0 0.0
        %368 = vmatpush2.msra.mxu0 0.0
        %369 = vmatprep.subr.mxu0 0.0
        %370 = vmatpush2.msra.mxu0 0.0
        %371 = vmatprep.subr.mxu0 0.0
        %372 = vmatpush2.msra.mxu0 0.0
        %373 = vmatprep.subr.mxu0 0.0
        %374 = vmatpush2.msra.mxu0 0.0
        %375 = vmatprep.subr.mxu0 0.0
        %376 = vmatpush2.msra.mxu0 0.0
        %377 = vmatprep.mubr.f32.mxu0 0.0
        %378 = vmatmul.mubr.f32.gmra.mxu0 %v211
        %v379 = vpop.f32.mrf.mxu0
        %v380 = vadd.f32 0.0, %v379
        %v381 = vpop.f32.mrf.mxu0
        %v382 = vadd.f32 0.0, %v381
        %383 = vmatprep.mubr.f32.mxu0 0.0
        %384 = vmatmul.mubr.f32.gmra.mxu0 %v214
        %v385 = vpop.f32.mrf.mxu0
        %v386 = vadd.f32 0.0, %v385
        %v387 = vpop.f32.mrf.mxu0
        %v388 = vadd.f32 0.0, %v387
        %389 = vmatprep.mubr.f32.mxu0 0.0
        %390 = vmatmul.mubr.f32.gmra.mxu0 %v217
        %v391 = vpop.f32.mrf.mxu0
        %v392 = vadd.f32 0.0, %v391
        %v393 = vpop.f32.mrf.mxu0
        %v394 = vadd.f32 0.0, %v393
        %395 = vmatprep.mubr.f32.mxu0 0.0
        %396 = vmatmul.mubr.f32.gmra.mxu0 %v220
        %v397 = vpop.f32.mrf.mxu0
        %v398 = vadd.f32 0.0, %v397
        %v399 = vpop.f32.mrf.mxu0
        %v400 = vadd.f32 0.0, %v399
        %401 = vmatprep.mubr.f32.mxu0 0.0
        %402 = vmatmul.mubr.f32.gmra.mxu0 %v223
        %v403 = vpop.f32.mrf.mxu0
        %v404 = vadd.f32 0.0, %v403
        %v405 = vpop.f32.mrf.mxu0
        %v406 = vadd.f32 0.0, %v405
        %407 = vmatprep.mubr.f32.mxu0 0.0
        %408 = vmatmul.mubr.f32.gmra.mxu0 %v226
        %v409 = vpop.f32.mrf.mxu0
        %v410 = vadd.f32 0.0, %v409
        %v411 = vpop.f32.mrf.mxu0
        %v412 = vadd.f32 0.0, %v411
        %413 = vmatprep.mubr.f32.mxu0 0.0
        %414 = vmatmul.mubr.f32.gmra.mxu0 %v229
        %v415 = vpop.f32.mrf.mxu0
        %v416 = vadd.f32 0.0, %v415
        %v417 = vpop.f32.mrf.mxu0
        %v418 = vadd.f32 0.0, %v417
        %419 = vmatprep.mubr.f32.mxu0 0.0
        %420 = vmatmul.mubr.f32.gmra.mxu0 %v232
        %v421 = vpop.f32.mrf.mxu0
        %v422 = vadd.f32 0.0, %v421
        %v423 = vpop.f32.mrf.mxu0
        %v424 = vadd.f32 0.0, %v423
        %425 = vmatprep.mubr.f32.mxu0 0.0
        %426 = vmatmul.mubr.f32.gmra.mxu0 %v235
        %v427 = vpop.f32.mrf.mxu0
        %v428 = vadd.f32 0.0, %v427
        %v429 = vpop.f32.mrf.mxu0
        %v430 = vadd.f32 0.0, %v429
        %431 = vmatprep.mubr.f32.mxu0 0.0
        %432 = vmatmul.mubr.f32.gmra.mxu0 %v238
        %v433 = vpop.f32.mrf.mxu0
        %v434 = vadd.f32 0.0, %v433
        %v435 = vpop.f32.mrf.mxu0
        %v436 = vadd.f32 0.0, %v435
        %437 = vmatprep.mubr.f32.mxu0 0.0
        %438 = vmatmul.mubr.f32.gmra.mxu0 %v241
        %v439 = vpop.f32.mrf.mxu0
        %v440 = vadd.f32 0.0, %v439
        %v441 = vpop.f32.mrf.mxu0
        %v442 = vadd.f32 0.0, %v441
        %443 = vmatprep.mubr.f32.mxu0 0.0
        %444 = vmatmul.mubr.f32.gmra.mxu0 %v244
        %v445 = vpop.f32.mrf.mxu0
        %v446 = vadd.f32 0.0, %v445
        %v447 = vpop.f32.mrf.mxu0
        %v448 = vadd.f32 0.0, %v447
        %449 = vmatprep.mubr.f32.mxu0 0.0
        %450 = vmatmul.mubr.f32.gmra.mxu0 %v247
        %v451 = vpop.f32.mrf.mxu0
        %v452 = vadd.f32 0.0, %v451
        %v453 = vpop.f32.mrf.mxu0
        %v454 = vadd.f32 0.0, %v453
        %455 = vmatprep.mubr.f32.mxu0 0.0
        %456 = vmatmul.mubr.f32.gmra.mxu0 %v250
        %v457 = vpop.f32.mrf.mxu0
        %v458 = vadd.f32 0.0, %v457
        %v459 = vpop.f32.mrf.mxu0
        %v460 = vadd.f32 0.0, %v459
        %461 = vmatprep.mubr.f32.mxu0 0.0
        %462 = vmatmul.mubr.f32.gmra.mxu0 %v253
        %v463 = vpop.f32.mrf.mxu0
        %v464 = vadd.f32 0.0, %v463
        %v465 = vpop.f32.mrf.mxu0
        %v466 = vadd.f32 0.0, %v465
        %467 = vmatprep.mubr.f32.mxu0 0.0
        %468 = vmatmul.mubr.f32.gmra.mxu0 %v256
        %v469 = vpop.f32.mrf.mxu0
        %v470 = vadd.f32 0.0, %v469
        %v471 = vpop.f32.mrf.mxu0
        %v472 = vadd.f32 0.0, %v471
        %473 = vmatprep.mubr.f32.mxu0 0.0
        %474 = vmatmul.mubr.f32.gmra.mxu0 %v259
        %v475 = vpop.f32.mrf.mxu0
        %v476 = vadd.f32 0.0, %v475
        %v477 = vpop.f32.mrf.mxu0
        %v478 = vadd.f32 0.0, %v477
        %479 = vmatprep.mubr.f32.mxu0 0.0
        %480 = vmatmul.mubr.f32.gmra.mxu0 %v262
        %v481 = vpop.f32.mrf.mxu0
        %v482 = vadd.f32 0.0, %v481
        %v483 = vpop.f32.mrf.mxu0
        %v484 = vadd.f32 0.0, %v483
        %485 = vmatprep.mubr.f32.mxu0 0.0
        %486 = vmatmul.mubr.f32.gmra.mxu0 %v265
        %v487 = vpop.f32.mrf.mxu0
        %v488 = vadd.f32 0.0, %v487
        %v489 = vpop.f32.mrf.mxu0
        %v490 = vadd.f32 0.0, %v489
        %491 = vmatprep.mubr.f32.mxu0 0.0
        %492 = vmatmul.mubr.f32.gmra.mxu0 %v268
        %v493 = vpop.f32.mrf.mxu0
        %v494 = vadd.f32 0.0, %v493
        %v495 = vpop.f32.mrf.mxu0
        %v496 = vadd.f32 0.0, %v495
        %497 = vmatprep.mubr.f32.mxu0 0.0
        %498 = vmatmul.mubr.f32.gmra.mxu0 %v271
        %v499 = vpop.f32.mrf.mxu0
        %v500 = vadd.f32 0.0, %v499
        %v501 = vpop.f32.mrf.mxu0
        %v502 = vadd.f32 0.0, %v501
        %503 = vmatprep.mubr.f32.mxu0 0.0
        %504 = vmatmul.mubr.f32.gmra.mxu0 %v274
        %v505 = vpop.f32.mrf.mxu0
        %v506 = vadd.f32 0.0, %v505
        %v507 = vpop.f32.mrf.mxu0
        %v508 = vadd.f32 0.0, %v507
        %509 = vmatprep.mubr.f32.mxu0 0.0
        %510 = vmatmul.mubr.f32.gmra.mxu0 %v277
        %v511 = vpop.f32.mrf.mxu0
        %v512 = vadd.f32 0.0, %v511
        %v513 = vpop.f32.mrf.mxu0
        %v514 = vadd.f32 0.0, %v513
        %515 = vmatprep.mubr.f32.mxu0 0.0
        %516 = vmatmul.mubr.f32.gmra.mxu0 %v280
        %v517 = vpop.f32.mrf.mxu0
        %v518 = vadd.f32 0.0, %v517
        %v519 = vpop.f32.mrf.mxu0
        %v520 = vadd.f32 0.0, %v519
        %521 = vmatprep.mubr.f32.mxu0 0.0
        %522 = vmatmul.mubr.f32.gmra.mxu0 %v283
        %v523 = vpop.f32.mrf.mxu0
        %v524 = vadd.f32 0.0, %v523
        %v525 = vpop.f32.mrf.mxu0
        %v526 = vadd.f32 0.0, %v525
        %527 = vmatprep.mubr.f32.mxu0 0.0
        %528 = vmatmul.mubr.f32.gmra.mxu0 %v286
        %v529 = vpop.f32.mrf.mxu0
        %v530 = vadd.f32 0.0, %v529
        %v531 = vpop.f32.mrf.mxu0
        %v532 = vadd.f32 0.0, %v531
        %533 = vmatprep.mubr.f32.mxu0 0.0
        %534 = vmatmul.mubr.f32.gmra.mxu0 %v289
        %v535 = vpop.f32.mrf.mxu0
        %v536 = vadd.f32 0.0, %v535
        %v537 = vpop.f32.mrf.mxu0
        %v538 = vadd.f32 0.0, %v537
        %539 = vmatprep.mubr.f32.mxu0 0.0
        %540 = vmatmul.mubr.f32.gmra.mxu0 %v292
        %v541 = vpop.f32.mrf.mxu0
        %v542 = vadd.f32 0.0, %v541
        %v543 = vpop.f32.mrf.mxu0
        %v544 = vadd.f32 0.0, %v543
        %545 = vmatprep.mubr.f32.mxu0 0.0
        %546 = vmatmul.mubr.f32.gmra.mxu0 %v295
        %v547 = vpop.f32.mrf.mxu0
        %v548 = vadd.f32 0.0, %v547
        %v549 = vpop.f32.mrf.mxu0
        %v550 = vadd.f32 0.0, %v549
        %551 = vmatprep.mubr.f32.mxu0 0.0
        %552 = vmatmul.mubr.f32.gmra.mxu0 %v298
        %v553 = vpop.f32.mrf.mxu0
        %v554 = vadd.f32 0.0, %v553
        %v555 = vpop.f32.mrf.mxu0
        %v556 = vadd.f32 0.0, %v555
        %557 = vmatprep.mubr.f32.mxu0 0.0
        %558 = vmatmul.mubr.f32.gmra.mxu0 %v301
        %v559 = vpop.f32.mrf.mxu0
        %v560 = vadd.f32 0.0, %v559
        %v561 = vpop.f32.mrf.mxu0
        %v562 = vadd.f32 0.0, %v561
        %563 = vmatprep.mubr.f32.mxu0 0.0
        %564 = vmatmul.mubr.f32.gmra.mxu0 %v304
        %v565 = vpop.f32.mrf.mxu0
        %v566 = vadd.f32 0.0, %v565
        %v567 = vpop.f32.mrf.mxu0
        %v568 = vadd.f32 0.0, %v567
        %569 = vdwg.mxu0
        %570 = vmatprep.subr.mxu0 0.0
        %571 = vmatpush1.msra.mxu0 0.0
        %572 = vmatprep.subr.mxu0 0.0
        %573 = vmatpush1.msra.mxu0 0.0
        %574 = vmatprep.subr.mxu0 0.0
        %575 = vmatpush1.msra.mxu0 0.0
        %576 = vmatprep.subr.mxu0 0.0
        %577 = vmatpush1.msra.mxu0 0.0
        %578 = vmatprep.subr.mxu0 0.0
        %579 = vmatpush1.msra.mxu0 0.0
        %580 = vmatprep.subr.mxu0 0.0
        %581 = vmatpush1.msra.mxu0 0.0
        %582 = vmatprep.subr.mxu0 0.0
        %583 = vmatpush1.msra.mxu0 0.0
        %584 = vmatprep.subr.mxu0 0.0
        %585 = vmatpush1.msra.mxu0 0.0
        %586 = vmatprep.subr.mxu0 0.0
        %587 = vmatpush1.msra.mxu0 0.0
        %588 = vmatprep.subr.mxu0 0.0
        %589 = vmatpush1.msra.mxu0 0.0
        %590 = vmatprep.subr.mxu0 0.0
        %591 = vmatpush1.msra.mxu0 0.0
        %592 = vmatprep.subr.mxu0 0.0
        %593 = vmatpush1.msra.mxu0 0.0
        %594 = vmatprep.subr.mxu0 0.0
        %595 = vmatpush1.msra.mxu0 0.0
        %596 = vmatprep.subr.mxu0 0.0
        %597 = vmatpush1.msra.mxu0 0.0
        %598 = vmatprep.subr.mxu0 0.0
        %599 = vmatpush1.msra.mxu0 0.0
        %600 = vmatprep.subr.mxu0 0.0
        %601 = vmatpush1.msra.mxu0 %v311
        %602 = vmatprep.subr.mxu0 0.0
        %603 = vmatpush2.msra.mxu0 0.0
        %604 = vmatprep.subr.mxu0 0.0
        %605 = vmatpush2.msra.mxu0 0.0
        %606 = vmatprep.subr.mxu0 0.0
        %607 = vmatpush2.msra.mxu0 0.0
        %608 = vmatprep.subr.mxu0 0.0
        %609 = vmatpush2.msra.mxu0 0.0
        %610 = vmatprep.subr.mxu0 0.0
        %611 = vmatpush2.msra.mxu0 0.0
        %612 = vmatprep.subr.mxu0 0.0
        %613 = vmatpush2.msra.mxu0 0.0
        %614 = vmatprep.subr.mxu0 0.0
        %615 = vmatpush2.msra.mxu0 0.0
        %616 = vmatprep.subr.mxu0 0.0
        %617 = vmatpush2.msra.mxu0 0.0
        %618 = vmatprep.subr.mxu0 0.0
        %619 = vmatpush2.msra.mxu0 0.0
        %620 = vmatprep.subr.mxu0 0.0
        %621 = vmatpush2.msra.mxu0 0.0
        %622 = vmatprep.subr.mxu0 0.0
        %623 = vmatpush2.msra.mxu0 0.0
        %624 = vmatprep.subr.mxu0 0.0
        %625 = vmatpush2.msra.mxu0 0.0
        %626 = vmatprep.subr.mxu0 0.0
        %627 = vmatpush2.msra.mxu0 0.0
        %628 = vmatprep.subr.mxu0 0.0
        %629 = vmatpush2.msra.mxu0 0.0
        %630 = vmatprep.subr.mxu0 0.0
        %631 = vmatpush2.msra.mxu0 0.0
        %632 = vmatprep.subr.mxu0 0.0
        %633 = vmatpush2.msra.mxu0 0.0
        %634 = vmatprep.mubr.f32.mxu0 0.0
        %635 = vmatmul.mubr.f32.gmra.mxu0 %v211
        %v636 = vpop.f32.mrf.mxu0
        %v637 = vadd.f32 0.0, %v636
        %v638 = vpop.f32.mrf.mxu0
        %639 = vmatprep.mubr.f32.mxu0 0.0
        %640 = vmatmul.mubr.f32.gmra.mxu0 %v214
        %v641 = vpop.f32.mrf.mxu0
        %v642 = vadd.f32 0.0, %v641
        %v643 = vpop.f32.mrf.mxu0
        %644 = vmatprep.mubr.f32.mxu0 0.0
        %645 = vmatmul.mubr.f32.gmra.mxu0 %v217
        %v646 = vpop.f32.mrf.mxu0
        %v647 = vadd.f32 0.0, %v646
        %v648 = vpop.f32.mrf.mxu0
        %649 = vmatprep.mubr.f32.mxu0 0.0
        %650 = vmatmul.mubr.f32.gmra.mxu0 %v220
        %v651 = vpop.f32.mrf.mxu0
        %v652 = vadd.f32 0.0, %v651
        %v653 = vpop.f32.mrf.mxu0
        %654 = vmatprep.mubr.f32.mxu0 0.0
        %655 = vmatmul.mubr.f32.gmra.mxu0 %v223
        %v656 = vpop.f32.mrf.mxu0
        %v657 = vadd.f32 0.0, %v656
        %v658 = vpop.f32.mrf.mxu0
        %659 = vmatprep.mubr.f32.mxu0 0.0
        %660 = vmatmul.mubr.f32.gmra.mxu0 %v226
        %v661 = vpop.f32.mrf.mxu0
        %v662 = vadd.f32 0.0, %v661
        %v663 = vpop.f32.mrf.mxu0
        %664 = vmatprep.mubr.f32.mxu0 0.0
        %665 = vmatmul.mubr.f32.gmra.mxu0 %v229
        %v666 = vpop.f32.mrf.mxu0
        %v667 = vadd.f32 0.0, %v666
        %v668 = vpop.f32.mrf.mxu0
        %669 = vmatprep.mubr.f32.mxu0 0.0
        %670 = vmatmul.mubr.f32.gmra.mxu0 %v232
        %v671 = vpop.f32.mrf.mxu0
        %v672 = vadd.f32 0.0, %v671
        %v673 = vpop.f32.mrf.mxu0
        %674 = vmatprep.mubr.f32.mxu0 0.0
        %675 = vmatmul.mubr.f32.gmra.mxu0 %v235
        %v676 = vpop.f32.mrf.mxu0
        %v677 = vadd.f32 0.0, %v676
        %v678 = vpop.f32.mrf.mxu0
        %679 = vmatprep.mubr.f32.mxu0 0.0
        %680 = vmatmul.mubr.f32.gmra.mxu0 %v238
        %v681 = vpop.f32.mrf.mxu0
        %v682 = vadd.f32 0.0, %v681
        %v683 = vpop.f32.mrf.mxu0
        %684 = vmatprep.mubr.f32.mxu0 0.0
        %685 = vmatmul.mubr.f32.gmra.mxu0 %v241
        %v686 = vpop.f32.mrf.mxu0
        %v687 = vadd.f32 0.0, %v686
        %v688 = vpop.f32.mrf.mxu0
        %689 = vmatprep.mubr.f32.mxu0 0.0
        %690 = vmatmul.mubr.f32.gmra.mxu0 %v244
        %v691 = vpop.f32.mrf.mxu0
        %v692 = vadd.f32 0.0, %v691
        %v693 = vpop.f32.mrf.mxu0
        %694 = vmatprep.mubr.f32.mxu0 0.0
        %695 = vmatmul.mubr.f32.gmra.mxu0 %v247
        %v696 = vpop.f32.mrf.mxu0
        %v697 = vadd.f32 0.0, %v696
        %v698 = vpop.f32.mrf.mxu0
        %699 = vmatprep.mubr.f32.mxu0 0.0
        %700 = vmatmul.mubr.f32.gmra.mxu0 %v250
        %v701 = vpop.f32.mrf.mxu0
        %v702 = vadd.f32 0.0, %v701
        %v703 = vpop.f32.mrf.mxu0
        %704 = vmatprep.mubr.f32.mxu0 0.0
        %705 = vmatmul.mubr.f32.gmra.mxu0 %v253
        %v706 = vpop.f32.mrf.mxu0
        %v707 = vadd.f32 0.0, %v706
        %v708 = vpop.f32.mrf.mxu0
        %709 = vmatprep.mubr.f32.mxu0 0.0
        %710 = vmatmul.mubr.f32.gmra.mxu0 %v256
        %v711 = vpop.f32.mrf.mxu0
        %v712 = vadd.f32 0.0, %v711
        %v713 = vpop.f32.mrf.mxu0
        %714 = vmatprep.mubr.f32.mxu0 0.0
        %715 = vmatmul.mubr.f32.gmra.mxu0 %v259
        %v716 = vpop.f32.mrf.mxu0
        %v717 = vadd.f32 0.0, %v716
        %v718 = vpop.f32.mrf.mxu0
        %719 = vmatprep.mubr.f32.mxu0 0.0
        %720 = vmatmul.mubr.f32.gmra.mxu0 %v262
        %v721 = vpop.f32.mrf.mxu0
        %v722 = vadd.f32 0.0, %v721
        %v723 = vpop.f32.mrf.mxu0
        %724 = vmatprep.mubr.f32.mxu0 0.0
        %725 = vmatmul.mubr.f32.gmra.mxu0 %v265
        %v726 = vpop.f32.mrf.mxu0
        %v727 = vadd.f32 0.0, %v726
        %v728 = vpop.f32.mrf.mxu0
        %729 = vmatprep.mubr.f32.mxu0 0.0
        %730 = vmatmul.mubr.f32.gmra.mxu0 %v268
        %v731 = vpop.f32.mrf.mxu0
        %v732 = vadd.f32 0.0, %v731
        %v733 = vpop.f32.mrf.mxu0
        %734 = vmatprep.mubr.f32.mxu0 0.0
        %735 = vmatmul.mubr.f32.gmra.mxu0 %v271
        %v736 = vpop.f32.mrf.mxu0
        %v737 = vadd.f32 0.0, %v736
        %v738 = vpop.f32.mrf.mxu0
        %739 = vmatprep.mubr.f32.mxu0 0.0
        %740 = vmatmul.mubr.f32.gmra.mxu0 %v274
        %v741 = vpop.f32.mrf.mxu0
        %v742 = vadd.f32 0.0, %v741
        %v743 = vpop.f32.mrf.mxu0
        %744 = vmatprep.mubr.f32.mxu0 0.0
        %745 = vmatmul.mubr.f32.gmra.mxu0 %v277
        %v746 = vpop.f32.mrf.mxu0
        %v747 = vadd.f32 0.0, %v746
        %v748 = vpop.f32.mrf.mxu0
        %749 = vmatprep.mubr.f32.mxu0 0.0
        %750 = vmatmul.mubr.f32.gmra.mxu0 %v280
        %v751 = vpop.f32.mrf.mxu0
        %v752 = vadd.f32 0.0, %v751
        %v753 = vpop.f32.mrf.mxu0
        %754 = vmatprep.mubr.f32.mxu0 0.0
        %755 = vmatmul.mubr.f32.gmra.mxu0 %v283
        %v756 = vpop.f32.mrf.mxu0
        %v757 = vadd.f32 0.0, %v756
        %v758 = vpop.f32.mrf.mxu0
        %759 = vmatprep.mubr.f32.mxu0 0.0
        %760 = vmatmul.mubr.f32.gmra.mxu0 %v286
        %v761 = vpop.f32.mrf.mxu0
        %v762 = vadd.f32 0.0, %v761
        %v763 = vpop.f32.mrf.mxu0
        %764 = vmatprep.mubr.f32.mxu0 0.0
        %765 = vmatmul.mubr.f32.gmra.mxu0 %v289
        %v766 = vpop.f32.mrf.mxu0
        %v767 = vadd.f32 0.0, %v766
        %v768 = vpop.f32.mrf.mxu0
        %769 = vmatprep.mubr.f32.mxu0 0.0
        %770 = vmatmul.mubr.f32.gmra.mxu0 %v292
        %v771 = vpop.f32.mrf.mxu0
        %v772 = vadd.f32 0.0, %v771
        %v773 = vpop.f32.mrf.mxu0
        %774 = vmatprep.mubr.f32.mxu0 0.0
        %775 = vmatmul.mubr.f32.gmra.mxu0 %v295
        %v776 = vpop.f32.mrf.mxu0
        %v777 = vadd.f32 0.0, %v776
        %v778 = vpop.f32.mrf.mxu0
        %779 = vmatprep.mubr.f32.mxu0 0.0
        %780 = vmatmul.mubr.f32.gmra.mxu0 %v298
        %v781 = vpop.f32.mrf.mxu0
        %v782 = vadd.f32 0.0, %v781
        %v783 = vpop.f32.mrf.mxu0
        %784 = vmatprep.mubr.f32.mxu0 0.0
        %785 = vmatmul.mubr.f32.gmra.mxu0 %v301
        %v786 = vpop.f32.mrf.mxu0
        %v787 = vadd.f32 0.0, %v786
        %v788 = vpop.f32.mrf.mxu0
        %789 = vmatprep.mubr.f32.mxu0 0.0
        %790 = vmatmul.mubr.f32.gmra.mxu0 %v304
        %v791 = vpop.f32.mrf.mxu0
        %v792 = vadd.f32 0.0, %v791
        %v793 = vpop.f32.mrf.mxu0
        %794 = vdwg.mxu0
        %v795 = vld [vmem:[%s2] sm:$0x1]
        %v796 = vlaneseq
        %v797 = vshrl.u32 %v796, 7
        %v798 = vsub.s32 0, %v797
        %v799 = vrot.slane %v795, %v798
        %v800 = vadd.f32 %v380, %v799
        %v801 = vadd.f32 %v386, %v799
        %v802 = vadd.f32 %v392, %v799
        %v803 = vadd.f32 %v398, %v799
        %v804 = vadd.f32 %v404, %v799
        %v805 = vadd.f32 %v410, %v799
        %v806 = vadd.f32 %v416, %v799
        %v807 = vadd.f32 %v422, %v799
        %v808 = vadd.f32 %v428, %v799
        %v809 = vadd.f32 %v434, %v799
        %v810 = vadd.f32 %v440, %v799
        %v811 = vadd.f32 %v446, %v799
        %v812 = vadd.f32 %v452, %v799
        %v813 = vadd.f32 %v458, %v799
        %v814 = vadd.f32 %v464, %v799
        %v815 = vadd.f32 %v470, %v799
        %v816 = vadd.f32 %v476, %v799
        %v817 = vadd.f32 %v482, %v799
        %v818 = vadd.f32 %v488, %v799
        %v819 = vadd.f32 %v494, %v799
        %v820 = vadd.f32 %v500, %v799
        %v821 = vadd.f32 %v506, %v799
        %v822 = vadd.f32 %v512, %v799
        %v823 = vadd.f32 %v518, %v799
        %v824 = vadd.f32 %v524, %v799
        %v825 = vadd.f32 %v530, %v799
        %v826 = vadd.f32 %v536, %v799
        %v827 = vadd.f32 %v542, %v799
        %v828 = vadd.f32 %v548, %v799
        %v829 = vadd.f32 %v554, %v799
        %v830 = vadd.f32 %v560, %v799
        %v831 = vadd.f32 %v566, %v799
        %v832 = vxor.u32 %v800, 2147483648
        %v833 = vxor.u32 %v801, 2147483648
        %v834 = vxor.u32 %v802, 2147483648
        %v835 = vxor.u32 %v803, 2147483648
        %v836 = vxor.u32 %v804, 2147483648
        %v837 = vxor.u32 %v805, 2147483648
        %v838 = vxor.u32 %v806, 2147483648
        %v839 = vxor.u32 %v807, 2147483648
        %v840 = vxor.u32 %v808, 2147483648
        %v841 = vxor.u32 %v809, 2147483648
        %v842 = vxor.u32 %v810, 2147483648
        %v843 = vxor.u32 %v811, 2147483648
        %v844 = vxor.u32 %v812, 2147483648
        %v845 = vxor.u32 %v813, 2147483648
        %v846 = vxor.u32 %v814, 2147483648
        %v847 = vxor.u32 %v815, 2147483648
        %v848 = vxor.u32 %v816, 2147483648
        %v849 = vxor.u32 %v817, 2147483648
        %v850 = vxor.u32 %v818, 2147483648
        %v851 = vxor.u32 %v819, 2147483648
        %v852 = vxor.u32 %v820, 2147483648
        %v853 = vxor.u32 %v821, 2147483648
        %v854 = vxor.u32 %v822, 2147483648
        %v855 = vxor.u32 %v823, 2147483648
        %v856 = vxor.u32 %v824, 2147483648
        %v857 = vxor.u32 %v825, 2147483648
        %v858 = vxor.u32 %v826, 2147483648
        %v859 = vxor.u32 %v827, 2147483648
        %v860 = vxor.u32 %v828, 2147483648
        %v861 = vxor.u32 %v829, 2147483648
        %v862 = vxor.u32 %v830, 2147483648
        %v863 = vxor.u32 %v831, 2147483648
        %v864 = vmul.f32 %v832, 1.442695
        %v865 = vpow.pop %v864
        %v866 = vmul.f32 %v833, 1.442695
        %v867 = vpow.pop %v866
        %v868 = vmul.f32 %v834, 1.442695
        %v869 = vpow.pop %v868
        %v870 = vmul.f32 %v835, 1.442695
        %v871 = vpow.pop %v870
        %v872 = vmul.f32 %v836, 1.442695
        %v873 = vpow.pop %v872
        %v874 = vmul.f32 %v837, 1.442695
        %v875 = vpow.pop %v874
        %v876 = vmul.f32 %v838, 1.442695
        %v877 = vpow.pop %v876
        %v878 = vmul.f32 %v839, 1.442695
        %v879 = vpow.pop %v878
        %v880 = vmul.f32 %v840, 1.442695
        %v881 = vpow.pop %v880
        %v882 = vmul.f32 %v841, 1.442695
        %v883 = vpow.pop %v882
        %v884 = vmul.f32 %v842, 1.442695
        %v885 = vpow.pop %v884
        %v886 = vmul.f32 %v843, 1.442695
        %v887 = vpow.pop %v886
        %v888 = vmul.f32 %v844, 1.442695
        %v889 = vpow.pop %v888
        %v890 = vmul.f32 %v845, 1.442695
        %v891 = vpow.pop %v890
        %v892 = vmul.f32 %v846, 1.442695
        %v893 = vpow.pop %v892
        %v894 = vmul.f32 %v847, 1.442695
        %v895 = vpow.pop %v894
        %v896 = vmul.f32 %v848, 1.442695
        %v897 = vpow.pop %v896
        %v898 = vmul.f32 %v849, 1.442695
        %v899 = vpow.pop %v898
        %v900 = vmul.f32 %v850, 1.442695
        %v901 = vpow.pop %v900
        %v902 = vmul.f32 %v851, 1.442695
        %v903 = vpow.pop %v902
        %v904 = vmul.f32 %v852, 1.442695
        %v905 = vpow.pop %v904
        %v906 = vmul.f32 %v853, 1.442695
        %v907 = vpow.pop %v906
        %v908 = vmul.f32 %v854, 1.442695
        %v909 = vpow.pop %v908
        %v910 = vmul.f32 %v855, 1.442695
        %v911 = vpow.pop %v910
        %v912 = vmul.f32 %v856, 1.442695
        %v913 = vpow.pop %v912
        %v914 = vmul.f32 %v857, 1.442695
        %v915 = vpow.pop %v914
        %v916 = vmul.f32 %v858, 1.442695
        %v917 = vpow.pop %v916
        %v918 = vmul.f32 %v859, 1.442695
        %v919 = vpow.pop %v918
        %v920 = vmul.f32 %v860, 1.442695
        %v921 = vpow.pop %v920
        %v922 = vmul.f32 %v861, 1.442695
        %v923 = vpow.pop %v922
        %v924 = vmul.f32 %v862, 1.442695
        %v925 = vpow.pop %v924
        %v926 = vmul.f32 %v863, 1.442695
        %v927 = vpow.pop %v926
        %v928 = vadd.f32 %v865, 1.0
        %v929 = vadd.f32 %v867, 1.0
        %v930 = vadd.f32 %v869, 1.0
        %v931 = vadd.f32 %v871, 1.0
        %v932 = vadd.f32 %v873, 1.0
        %v933 = vadd.f32 %v875, 1.0
        %v934 = vadd.f32 %v877, 1.0
        %v935 = vadd.f32 %v879, 1.0
        %v936 = vadd.f32 %v881, 1.0
        %v937 = vadd.f32 %v883, 1.0
        %v938 = vadd.f32 %v885, 1.0
        %v939 = vadd.f32 %v887, 1.0
        %v940 = vadd.f32 %v889, 1.0
        %v941 = vadd.f32 %v891, 1.0
        %v942 = vadd.f32 %v893, 1.0
        %v943 = vadd.f32 %v895, 1.0
        %v944 = vadd.f32 %v897, 1.0
        %v945 = vadd.f32 %v899, 1.0
        %v946 = vadd.f32 %v901, 1.0
        %v947 = vadd.f32 %v903, 1.0
        %v948 = vadd.f32 %v905, 1.0
        %v949 = vadd.f32 %v907, 1.0
        %v950 = vadd.f32 %v909, 1.0
        %v951 = vadd.f32 %v911, 1.0
        %v952 = vadd.f32 %v913, 1.0
        %v953 = vadd.f32 %v915, 1.0
        %v954 = vadd.f32 %v917, 1.0
        %v955 = vadd.f32 %v919, 1.0
        %v956 = vadd.f32 %v921, 1.0
        %v957 = vadd.f32 %v923, 1.0
        %v958 = vadd.f32 %v925, 1.0
        %v959 = vadd.f32 %v927, 1.0
        %v960 = vrcp.pop %v928
        %v961 = vmul.f32 1.0, %v960
        %v962 = vrcp.pop %v929
        %v963 = vmul.f32 1.0, %v962
        %v964 = vrcp.pop %v930
        %v965 = vmul.f32 1.0, %v964
        %v966 = vrcp.pop %v931
        %v967 = vmul.f32 1.0, %v966
        %v968 = vrcp.pop %v932
        %v969 = vmul.f32 1.0, %v968
        %v970 = vrcp.pop %v933
        %v971 = vmul.f32 1.0, %v970
        %v972 = vrcp.pop %v934
        %v973 = vmul.f32 1.0, %v972
        %v974 = vrcp.pop %v935
        %v975 = vmul.f32 1.0, %v974
        %v976 = vrcp.pop %v936
        %v977 = vmul.f32 1.0, %v976
        %v978 = vrcp.pop %v937
        %v979 = vmul.f32 1.0, %v978
        %v980 = vrcp.pop %v938
        %v981 = vmul.f32 1.0, %v980
        %v982 = vrcp.pop %v939
        %v983 = vmul.f32 1.0, %v982
        %v984 = vrcp.pop %v940
        %v985 = vmul.f32 1.0, %v984
        %v986 = vrcp.pop %v941
        %v987 = vmul.f32 1.0, %v986
        %v988 = vrcp.pop %v942
        %v989 = vmul.f32 1.0, %v988
        %v990 = vrcp.pop %v943
        %v991 = vmul.f32 1.0, %v990
        %v992 = vrcp.pop %v944
        %v993 = vmul.f32 1.0, %v992
        %v994 = vrcp.pop %v945
        %v995 = vmul.f32 1.0, %v994
        %v996 = vrcp.pop %v946
        %v997 = vmul.f32 1.0, %v996
        %v998 = vrcp.pop %v947
        %v999 = vmul.f32 1.0, %v998
        %v1000 = vrcp.pop %v948
        %v1001 = vmul.f32 1.0, %v1000
        %v1002 = vrcp.pop %v949
        %v1003 = vmul.f32 1.0, %v1002
        %v1004 = vrcp.pop %v950
        %v1005 = vmul.f32 1.0, %v1004
        %v1006 = vrcp.pop %v951
        %v1007 = vmul.f32 1.0, %v1006
        %v1008 = vrcp.pop %v952
        %v1009 = vmul.f32 1.0, %v1008
        %v1010 = vrcp.pop %v953
        %v1011 = vmul.f32 1.0, %v1010
        %v1012 = vrcp.pop %v954
        %v1013 = vmul.f32 1.0, %v1012
        %v1014 = vrcp.pop %v955
        %v1015 = vmul.f32 1.0, %v1014
        %v1016 = vrcp.pop %v956
        %v1017 = vmul.f32 1.0, %v1016
        %v1018 = vrcp.pop %v957
        %v1019 = vmul.f32 1.0, %v1018
        %v1020 = vrcp.pop %v958
        %v1021 = vmul.f32 1.0, %v1020
        %v1022 = vrcp.pop %v959
        %v1023 = vmul.f32 1.0, %v1022
        %v1024 = vld [vmem:[%s2 + $0x1] sm:$0x1]
        %v1025 = vlaneseq
        %v1026 = vshrl.u32 %v1025, 7
        %v1027 = vsub.s32 0, %v1026
        %v1028 = vrot.slane %v1024, %v1027
        %v1029 = vadd.f32 %v382, %v1028
        %v1030 = vadd.f32 %v388, %v1028
        %v1031 = vadd.f32 %v394, %v1028
        %v1032 = vadd.f32 %v400, %v1028
        %v1033 = vadd.f32 %v406, %v1028
        %v1034 = vadd.f32 %v412, %v1028
        %v1035 = vadd.f32 %v418, %v1028
        %v1036 = vadd.f32 %v424, %v1028
        %v1037 = vadd.f32 %v430, %v1028
        %v1038 = vadd.f32 %v436, %v1028
        %v1039 = vadd.f32 %v442, %v1028
        %v1040 = vadd.f32 %v448, %v1028
        %v1041 = vadd.f32 %v454, %v1028
        %v1042 = vadd.f32 %v460, %v1028
        %v1043 = vadd.f32 %v466, %v1028
        %v1044 = vadd.f32 %v472, %v1028
        %v1045 = vadd.f32 %v478, %v1028
        %v1046 = vadd.f32 %v484, %v1028
        %v1047 = vadd.f32 %v490, %v1028
        %v1048 = vadd.f32 %v496, %v1028
        %v1049 = vadd.f32 %v502, %v1028
        %v1050 = vadd.f32 %v508, %v1028
        %v1051 = vadd.f32 %v514, %v1028
        %v1052 = vadd.f32 %v520, %v1028
        %v1053 = vadd.f32 %v526, %v1028
        %v1054 = vadd.f32 %v532, %v1028
        %v1055 = vadd.f32 %v538, %v1028
        %v1056 = vadd.f32 %v544, %v1028
        %v1057 = vadd.f32 %v550, %v1028
        %v1058 = vadd.f32 %v556, %v1028
        %v1059 = vadd.f32 %v562, %v1028
        %v1060 = vadd.f32 %v568, %v1028
        %v1061 = vxor.u32 %v1029, 2147483648
        %v1062 = vxor.u32 %v1030, 2147483648
        %v1063 = vxor.u32 %v1031, 2147483648
        %v1064 = vxor.u32 %v1032, 2147483648
        %v1065 = vxor.u32 %v1033, 2147483648
        %v1066 = vxor.u32 %v1034, 2147483648
        %v1067 = vxor.u32 %v1035, 2147483648
        %v1068 = vxor.u32 %v1036, 2147483648
        %v1069 = vxor.u32 %v1037, 2147483648
        %v1070 = vxor.u32 %v1038, 2147483648
        %v1071 = vxor.u32 %v1039, 2147483648
        %v1072 = vxor.u32 %v1040, 2147483648
        %v1073 = vxor.u32 %v1041, 2147483648
        %v1074 = vxor.u32 %v1042, 2147483648
        %v1075 = vxor.u32 %v1043, 2147483648
        %v1076 = vxor.u32 %v1044, 2147483648
        %v1077 = vxor.u32 %v1045, 2147483648
        %v1078 = vxor.u32 %v1046, 2147483648
        %v1079 = vxor.u32 %v1047, 2147483648
        %v1080 = vxor.u32 %v1048, 2147483648
        %v1081 = vxor.u32 %v1049, 2147483648
        %v1082 = vxor.u32 %v1050, 2147483648
        %v1083 = vxor.u32 %v1051, 2147483648
        %v1084 = vxor.u32 %v1052, 2147483648
        %v1085 = vxor.u32 %v1053, 2147483648
        %v1086 = vxor.u32 %v1054, 2147483648
        %v1087 = vxor.u32 %v1055, 2147483648
        %v1088 = vxor.u32 %v1056, 2147483648
        %v1089 = vxor.u32 %v1057, 2147483648
        %v1090 = vxor.u32 %v1058, 2147483648
        %v1091 = vxor.u32 %v1059, 2147483648
        %v1092 = vxor.u32 %v1060, 2147483648
        %v1093 = vmul.f32 %v1061, 1.442695
        %v1094 = vpow.pop %v1093
        %v1095 = vmul.f32 %v1062, 1.442695
        %v1096 = vpow.pop %v1095
        %v1097 = vmul.f32 %v1063, 1.442695
        %v1098 = vpow.pop %v1097
        %v1099 = vmul.f32 %v1064, 1.442695
        %v1100 = vpow.pop %v1099
        %v1101 = vmul.f32 %v1065, 1.442695
        %v1102 = vpow.pop %v1101
        %v1103 = vmul.f32 %v1066, 1.442695
        %v1104 = vpow.pop %v1103
        %v1105 = vmul.f32 %v1067, 1.442695
        %v1106 = vpow.pop %v1105
        %v1107 = vmul.f32 %v1068, 1.442695
        %v1108 = vpow.pop %v1107
        %v1109 = vmul.f32 %v1069, 1.442695
        %v1110 = vpow.pop %v1109
        %v1111 = vmul.f32 %v1070, 1.442695
        %v1112 = vpow.pop %v1111
        %v1113 = vmul.f32 %v1071, 1.442695
        %v1114 = vpow.pop %v1113
        %v1115 = vmul.f32 %v1072, 1.442695
        %v1116 = vpow.pop %v1115
        %v1117 = vmul.f32 %v1073, 1.442695
        %v1118 = vpow.pop %v1117
        %v1119 = vmul.f32 %v1074, 1.442695
        %v1120 = vpow.pop %v1119
        %v1121 = vmul.f32 %v1075, 1.442695
        %v1122 = vpow.pop %v1121
        %v1123 = vmul.f32 %v1076, 1.442695
        %v1124 = vpow.pop %v1123
        %v1125 = vmul.f32 %v1077, 1.442695
        %v1126 = vpow.pop %v1125
        %v1127 = vmul.f32 %v1078, 1.442695
        %v1128 = vpow.pop %v1127
        %v1129 = vmul.f32 %v1079, 1.442695
        %v1130 = vpow.pop %v1129
        %v1131 = vmul.f32 %v1080, 1.442695
        %v1132 = vpow.pop %v1131
        %v1133 = vmul.f32 %v1081, 1.442695
        %v1134 = vpow.pop %v1133
        %v1135 = vmul.f32 %v1082, 1.442695
        %v1136 = vpow.pop %v1135
        %v1137 = vmul.f32 %v1083, 1.442695
        %v1138 = vpow.pop %v1137
        %v1139 = vmul.f32 %v1084, 1.442695
        %v1140 = vpow.pop %v1139
        %v1141 = vmul.f32 %v1085, 1.442695
        %v1142 = vpow.pop %v1141
        %v1143 = vmul.f32 %v1086, 1.442695
        %v1144 = vpow.pop %v1143
        %v1145 = vmul.f32 %v1087, 1.442695
        %v1146 = vpow.pop %v1145
        %v1147 = vmul.f32 %v1088, 1.442695
        %v1148 = vpow.pop %v1147
        %v1149 = vmul.f32 %v1089, 1.442695
        %v1150 = vpow.pop %v1149
        %v1151 = vmul.f32 %v1090, 1.442695
        %v1152 = vpow.pop %v1151
        %v1153 = vmul.f32 %v1091, 1.442695
        %v1154 = vpow.pop %v1153
        %v1155 = vmul.f32 %v1092, 1.442695
        %v1156 = vpow.pop %v1155
        %v1157 = vadd.f32 %v1094, 1.0
        %v1158 = vadd.f32 %v1096, 1.0
        %v1159 = vadd.f32 %v1098, 1.0
        %v1160 = vadd.f32 %v1100, 1.0
        %v1161 = vadd.f32 %v1102, 1.0
        %v1162 = vadd.f32 %v1104, 1.0
        %v1163 = vadd.f32 %v1106, 1.0
        %v1164 = vadd.f32 %v1108, 1.0
        %v1165 = vadd.f32 %v1110, 1.0
        %v1166 = vadd.f32 %v1112, 1.0
        %v1167 = vadd.f32 %v1114, 1.0
        %v1168 = vadd.f32 %v1116, 1.0
        %v1169 = vadd.f32 %v1118, 1.0
        %v1170 = vadd.f32 %v1120, 1.0
        %v1171 = vadd.f32 %v1122, 1.0
        %v1172 = vadd.f32 %v1124, 1.0
        %v1173 = vadd.f32 %v1126, 1.0
        %v1174 = vadd.f32 %v1128, 1.0
        %v1175 = vadd.f32 %v1130, 1.0
        %v1176 = vadd.f32 %v1132, 1.0
        %v1177 = vadd.f32 %v1134, 1.0
        %v1178 = vadd.f32 %v1136, 1.0
        %v1179 = vadd.f32 %v1138, 1.0
        %v1180 = vadd.f32 %v1140, 1.0
        %v1181 = vadd.f32 %v1142, 1.0
        %v1182 = vadd.f32 %v1144, 1.0
        %v1183 = vadd.f32 %v1146, 1.0
        %v1184 = vadd.f32 %v1148, 1.0
        %v1185 = vadd.f32 %v1150, 1.0
        %v1186 = vadd.f32 %v1152, 1.0
        %v1187 = vadd.f32 %v1154, 1.0
        %v1188 = vadd.f32 %v1156, 1.0
        %v1189 = vrcp.pop %v1157
        %v1190 = vmul.f32 1.0, %v1189
        %v1191 = vrcp.pop %v1158
        %v1192 = vmul.f32 1.0, %v1191
        %v1193 = vrcp.pop %v1159
        %v1194 = vmul.f32 1.0, %v1193
        %v1195 = vrcp.pop %v1160
        %v1196 = vmul.f32 1.0, %v1195
        %v1197 = vrcp.pop %v1161
        %v1198 = vmul.f32 1.0, %v1197
        %v1199 = vrcp.pop %v1162
        %v1200 = vmul.f32 1.0, %v1199
        %v1201 = vrcp.pop %v1163
        %v1202 = vmul.f32 1.0, %v1201
        %v1203 = vrcp.pop %v1164
        %v1204 = vmul.f32 1.0, %v1203
        %v1205 = vrcp.pop %v1165
        %v1206 = vmul.f32 1.0, %v1205
        %v1207 = vrcp.pop %v1166
        %v1208 = vmul.f32 1.0, %v1207
        %v1209 = vrcp.pop %v1167
        %v1210 = vmul.f32 1.0, %v1209
        %v1211 = vrcp.pop %v1168
        %v1212 = vmul.f32 1.0, %v1211
        %v1213 = vrcp.pop %v1169
        %v1214 = vmul.f32 1.0, %v1213
        %v1215 = vrcp.pop %v1170
        %v1216 = vmul.f32 1.0, %v1215
        %v1217 = vrcp.pop %v1171
        %v1218 = vmul.f32 1.0, %v1217
        %v1219 = vrcp.pop %v1172
        %v1220 = vmul.f32 1.0, %v1219
        %v1221 = vrcp.pop %v1173
        %v1222 = vmul.f32 1.0, %v1221
        %v1223 = vrcp.pop %v1174
        %v1224 = vmul.f32 1.0, %v1223
        %v1225 = vrcp.pop %v1175
        %v1226 = vmul.f32 1.0, %v1225
        %v1227 = vrcp.pop %v1176
        %v1228 = vmul.f32 1.0, %v1227
        %v1229 = vrcp.pop %v1177
        %v1230 = vmul.f32 1.0, %v1229
        %v1231 = vrcp.pop %v1178
        %v1232 = vmul.f32 1.0, %v1231
        %v1233 = vrcp.pop %v1179
        %v1234 = vmul.f32 1.0, %v1233
        %v1235 = vrcp.pop %v1180
        %v1236 = vmul.f32 1.0, %v1235
        %v1237 = vrcp.pop %v1181
        %v1238 = vmul.f32 1.0, %v1237
        %v1239 = vrcp.pop %v1182
        %v1240 = vmul.f32 1.0, %v1239
        %v1241 = vrcp.pop %v1183
        %v1242 = vmul.f32 1.0, %v1241
        %v1243 = vrcp.pop %v1184
        %v1244 = vmul.f32 1.0, %v1243
        %v1245 = vrcp.pop %v1185
        %v1246 = vmul.f32 1.0, %v1245
        %v1247 = vrcp.pop %v1186
        %v1248 = vmul.f32 1.0, %v1247
        %v1249 = vrcp.pop %v1187
        %v1250 = vmul.f32 1.0, %v1249
        %v1251 = vrcp.pop %v1188
        %v1252 = vmul.f32 1.0, %v1251
        %v1253 = vld [vmem:[%s2 + $0x2] sm:$0x1]
        %v1254 = vlaneseq
        %v1255 = vshrl.u32 %v1254, 7
        %v1256 = vsub.s32 0, %v1255
        %v1257 = vrot.slane %v1253, %v1256
        %v1258 = vadd.f32 %v637, %v1257
        %v1259 = vadd.f32 %v642, %v1257
        %v1260 = vadd.f32 %v647, %v1257
        %v1261 = vadd.f32 %v652, %v1257
        %v1262 = vadd.f32 %v657, %v1257
        %v1263 = vadd.f32 %v662, %v1257
        %v1264 = vadd.f32 %v667, %v1257
        %v1265 = vadd.f32 %v672, %v1257
        %v1266 = vadd.f32 %v677, %v1257
        %v1267 = vadd.f32 %v682, %v1257
        %v1268 = vadd.f32 %v687, %v1257
        %v1269 = vadd.f32 %v692, %v1257
        %v1270 = vadd.f32 %v697, %v1257
        %v1271 = vadd.f32 %v702, %v1257
        %v1272 = vadd.f32 %v707, %v1257
        %v1273 = vadd.f32 %v712, %v1257
        %v1274 = vadd.f32 %v717, %v1257
        %v1275 = vadd.f32 %v722, %v1257
        %v1276 = vadd.f32 %v727, %v1257
        %v1277 = vadd.f32 %v732, %v1257
        %v1278 = vadd.f32 %v737, %v1257
        %v1279 = vadd.f32 %v742, %v1257
        %v1280 = vadd.f32 %v747, %v1257
        %v1281 = vadd.f32 %v752, %v1257
        %v1282 = vadd.f32 %v757, %v1257
        %v1283 = vadd.f32 %v762, %v1257
        %v1284 = vadd.f32 %v767, %v1257
        %v1285 = vadd.f32 %v772, %v1257
        %v1286 = vadd.f32 %v777, %v1257
        %v1287 = vadd.f32 %v782, %v1257
        %v1288 = vadd.f32 %v787, %v1257
        %v1289 = vadd.f32 %v792, %v1257
        %v1290 = vld [vmem:[%s2 + $0x3] sm:$0x1]
        %v1291 = vlaneseq
        %v1292 = vshrl.u32 %v1291, 7
        %v1293 = vsub.s32 0, %v1292
        %v1294 = vrot.slane %v1290, %v1293
        %v1295 = vmul.f32 %v961, %v1294
        %v1296 = vmul.f32 %v963, %v1294
        %v1297 = vmul.f32 %v965, %v1294
        %v1298 = vmul.f32 %v967, %v1294
        %v1299 = vmul.f32 %v969, %v1294
        %v1300 = vmul.f32 %v971, %v1294
        %v1301 = vmul.f32 %v973, %v1294
        %v1302 = vmul.f32 %v975, %v1294
        %v1303 = vmul.f32 %v977, %v1294
        %v1304 = vmul.f32 %v979, %v1294
        %v1305 = vmul.f32 %v981, %v1294
        %v1306 = vmul.f32 %v983, %v1294
        %v1307 = vmul.f32 %v985, %v1294
        %v1308 = vmul.f32 %v987, %v1294
        %v1309 = vmul.f32 %v989, %v1294
        %v1310 = vmul.f32 %v991, %v1294
        %v1311 = vmul.f32 %v993, %v1294
        %v1312 = vmul.f32 %v995, %v1294
        %v1313 = vmul.f32 %v997, %v1294
        %v1314 = vmul.f32 %v999, %v1294
        %v1315 = vmul.f32 %v1001, %v1294
        %v1316 = vmul.f32 %v1003, %v1294
        %v1317 = vmul.f32 %v1005, %v1294
        %v1318 = vmul.f32 %v1007, %v1294
        %v1319 = vmul.f32 %v1009, %v1294
        %v1320 = vmul.f32 %v1011, %v1294
        %v1321 = vmul.f32 %v1013, %v1294
        %v1322 = vmul.f32 %v1015, %v1294
        %v1323 = vmul.f32 %v1017, %v1294
        %v1324 = vmul.f32 %v1019, %v1294
        %v1325 = vmul.f32 %v1021, %v1294
        %v1326 = vmul.f32 %v1023, %v1294
        %v1327 = vadd.f32 %v1258, %v1295
        %v1328 = vadd.f32 %v1259, %v1296
        %v1329 = vadd.f32 %v1260, %v1297
        %v1330 = vadd.f32 %v1261, %v1298
        %v1331 = vadd.f32 %v1262, %v1299
        %v1332 = vadd.f32 %v1263, %v1300
        %v1333 = vadd.f32 %v1264, %v1301
        %v1334 = vadd.f32 %v1265, %v1302
        %v1335 = vadd.f32 %v1266, %v1303
        %v1336 = vadd.f32 %v1267, %v1304
        %v1337 = vadd.f32 %v1268, %v1305
        %v1338 = vadd.f32 %v1269, %v1306
        %v1339 = vadd.f32 %v1270, %v1307
        %v1340 = vadd.f32 %v1271, %v1308
        %v1341 = vadd.f32 %v1272, %v1309
        %v1342 = vadd.f32 %v1273, %v1310
        %v1343 = vadd.f32 %v1274, %v1311
        %v1344 = vadd.f32 %v1275, %v1312
        %v1345 = vadd.f32 %v1276, %v1313
        %v1346 = vadd.f32 %v1277, %v1314
        %v1347 = vadd.f32 %v1278, %v1315
        %v1348 = vadd.f32 %v1279, %v1316
        %v1349 = vadd.f32 %v1280, %v1317
        %v1350 = vadd.f32 %v1281, %v1318
        %v1351 = vadd.f32 %v1282, %v1319
        %v1352 = vadd.f32 %v1283, %v1320
        %v1353 = vadd.f32 %v1284, %v1321
        %v1354 = vadd.f32 %v1285, %v1322
        %v1355 = vadd.f32 %v1286, %v1323
        %v1356 = vadd.f32 %v1287, %v1324
        %v1357 = vadd.f32 %v1288, %v1325
        %v1358 = vadd.f32 %v1289, %v1326
        %v1359 = vtanh.pop %v1327
        %v1360 = vtanh.pop %v1328
        %v1361 = vtanh.pop %v1329
        %v1362 = vtanh.pop %v1330
        %v1363 = vtanh.pop %v1331
        %v1364 = vtanh.pop %v1332
        %v1365 = vtanh.pop %v1333
        %v1366 = vtanh.pop %v1334
        %v1367 = vtanh.pop %v1335
        %v1368 = vtanh.pop %v1336
        %v1369 = vtanh.pop %v1337
        %v1370 = vtanh.pop %v1338
        %v1371 = vtanh.pop %v1339
        %v1372 = vtanh.pop %v1340
        %v1373 = vtanh.pop %v1341
        %v1374 = vtanh.pop %v1342
        %v1375 = vtanh.pop %v1343
        %v1376 = vtanh.pop %v1344
        %v1377 = vtanh.pop %v1345
        %v1378 = vtanh.pop %v1346
        %v1379 = vtanh.pop %v1347
        %v1380 = vtanh.pop %v1348
        %v1381 = vtanh.pop %v1349
        %v1382 = vtanh.pop %v1350
        %v1383 = vtanh.pop %v1351
        %v1384 = vtanh.pop %v1352
        %v1385 = vtanh.pop %v1353
        %v1386 = vtanh.pop %v1354
        %v1387 = vtanh.pop %v1355
        %v1388 = vtanh.pop %v1356
        %v1389 = vtanh.pop %v1357
        %v1390 = vtanh.pop %v1358
        %v1391 = vsub.f32 1.0, %v1190
        %v1392 = vsub.f32 1.0, %v1192
        %v1393 = vsub.f32 1.0, %v1194
        %v1394 = vsub.f32 1.0, %v1196
        %v1395 = vsub.f32 1.0, %v1198
        %v1396 = vsub.f32 1.0, %v1200
        %v1397 = vsub.f32 1.0, %v1202
        %v1398 = vsub.f32 1.0, %v1204
        %v1399 = vsub.f32 1.0, %v1206
        %v1400 = vsub.f32 1.0, %v1208
        %v1401 = vsub.f32 1.0, %v1210
        %v1402 = vsub.f32 1.0, %v1212
        %v1403 = vsub.f32 1.0, %v1214
        %v1404 = vsub.f32 1.0, %v1216
        %v1405 = vsub.f32 1.0, %v1218
        %v1406 = vsub.f32 1.0, %v1220
        %v1407 = vsub.f32 1.0, %v1222
        %v1408 = vsub.f32 1.0, %v1224
        %v1409 = vsub.f32 1.0, %v1226
        %v1410 = vsub.f32 1.0, %v1228
        %v1411 = vsub.f32 1.0, %v1230
        %v1412 = vsub.f32 1.0, %v1232
        %v1413 = vsub.f32 1.0, %v1234
        %v1414 = vsub.f32 1.0, %v1236
        %v1415 = vsub.f32 1.0, %v1238
        %v1416 = vsub.f32 1.0, %v1240
        %v1417 = vsub.f32 1.0, %v1242
        %v1418 = vsub.f32 1.0, %v1244
        %v1419 = vsub.f32 1.0, %v1246
        %v1420 = vsub.f32 1.0, %v1248
        %v1421 = vsub.f32 1.0, %v1250
        %v1422 = vsub.f32 1.0, %v1252
        %v1423 = vmul.f32 %v1391, %v1359
        %v1424 = vmul.f32 %v1392, %v1360
        %v1425 = vmul.f32 %v1393, %v1361
        %v1426 = vmul.f32 %v1394, %v1362
        %v1427 = vmul.f32 %v1395, %v1363
        %v1428 = vmul.f32 %v1396, %v1364
        %v1429 = vmul.f32 %v1397, %v1365
        %v1430 = vmul.f32 %v1398, %v1366
        %v1431 = vmul.f32 %v1399, %v1367
        %v1432 = vmul.f32 %v1400, %v1368
        %v1433 = vmul.f32 %v1401, %v1369
        %v1434 = vmul.f32 %v1402, %v1370
        %v1435 = vmul.f32 %v1403, %v1371
        %v1436 = vmul.f32 %v1404, %v1372
        %v1437 = vmul.f32 %v1405, %v1373
        %v1438 = vmul.f32 %v1406, %v1374
        %v1439 = vmul.f32 %v1407, %v1375
        %v1440 = vmul.f32 %v1408, %v1376
        %v1441 = vmul.f32 %v1409, %v1377
        %v1442 = vmul.f32 %v1410, %v1378
        %v1443 = vmul.f32 %v1411, %v1379
        %v1444 = vmul.f32 %v1412, %v1380
        %v1445 = vmul.f32 %v1413, %v1381
        %v1446 = vmul.f32 %v1414, %v1382
        %v1447 = vmul.f32 %v1415, %v1383
        %v1448 = vmul.f32 %v1416, %v1384
        %v1449 = vmul.f32 %v1417, %v1385
        %v1450 = vmul.f32 %v1418, %v1386
        %v1451 = vmul.f32 %v1419, %v1387
        %v1452 = vmul.f32 %v1420, %v1388
        %v1453 = vmul.f32 %v1421, %v1389
        %v1454 = vmul.f32 %v1422, %v1390
        %v1455 = vpack.c.bf16 %v1424, %v1423
        %v1456 = vpack.c.bf16 %v1426, %v1425
        %v1457 = vpack.c.bf16 %v1428, %v1427
        %v1458 = vpack.c.bf16 %v1430, %v1429
        %v1459 = vpack.c.bf16 %v1432, %v1431
        %v1460 = vpack.c.bf16 %v1434, %v1433
        %v1461 = vpack.c.bf16 %v1436, %v1435
        %v1462 = vpack.c.bf16 %v1438, %v1437
        %v1463 = vpack.c.bf16 %v1440, %v1439
        %v1464 = vpack.c.bf16 %v1442, %v1441
        %v1465 = vpack.c.bf16 %v1444, %v1443
        %v1466 = vpack.c.bf16 %v1446, %v1445
        %v1467 = vpack.c.bf16 %v1448, %v1447
        %v1468 = vpack.c.bf16 %v1450, %v1449
        %v1469 = vpack.c.bf16 %v1452, %v1451
        %v1470 = vpack.c.bf16 %v1454, %v1453
        %v1487 = vunpack.c.l.b16 %v1455
        %v1488 = vunpack.c.h.b16 %v1455
        %v1489 = vunpack.c.l.b16 %v1456
        %v1490 = vunpack.c.h.b16 %v1456
        %v1491 = vunpack.c.l.b16 %v1457
        %v1492 = vunpack.c.h.b16 %v1457
        %v1493 = vunpack.c.l.b16 %v1458
        %v1494 = vunpack.c.h.b16 %v1458
        %v1495 = vunpack.c.l.b16 %v1459
        %v1496 = vunpack.c.h.b16 %v1459
        %v1497 = vunpack.c.l.b16 %v1460
        %v1498 = vunpack.c.h.b16 %v1460
        %v1499 = vunpack.c.l.b16 %v1461
        %v1500 = vunpack.c.h.b16 %v1461
        %v1501 = vunpack.c.l.b16 %v1462
        %v1502 = vunpack.c.h.b16 %v1462
        %v1503 = vunpack.c.l.b16 %v1463
        %v1504 = vunpack.c.h.b16 %v1463
        %v1505 = vunpack.c.l.b16 %v1464
        %v1506 = vunpack.c.h.b16 %v1464
        %v1507 = vunpack.c.l.b16 %v1465
        %v1508 = vunpack.c.h.b16 %v1465
        %v1509 = vunpack.c.l.b16 %v1466
        %v1510 = vunpack.c.h.b16 %v1466
        %v1511 = vunpack.c.l.b16 %v1467
        %v1512 = vunpack.c.h.b16 %v1467
        %v1513 = vunpack.c.l.b16 %v1468
        %v1514 = vunpack.c.h.b16 %v1468
        %v1515 = vunpack.c.l.b16 %v1469
        %v1516 = vunpack.c.h.b16 %v1469
        %v1517 = vunpack.c.l.b16 %v1470
        %v1518 = vunpack.c.h.b16 %v1470
        %v1519 = vpack.c.b16 %v1487, %v1487
        %v1520 = vpack.c.b16 %v1488, %v1488
        %v1521 = vpack.c.b16 %v1489, %v1489
        %v1522 = vpack.c.b16 %v1490, %v1490
        %v1523 = vpack.c.b16 %v1491, %v1491
        %v1524 = vpack.c.b16 %v1492, %v1492
        %v1525 = vpack.c.b16 %v1493, %v1493
        %v1526 = vpack.c.b16 %v1494, %v1494
        %v1527 = vpack.c.b16 %v1495, %v1495
        %v1528 = vpack.c.b16 %v1496, %v1496
        %v1529 = vpack.c.b16 %v1497, %v1497
        %v1530 = vpack.c.b16 %v1498, %v1498
        %v1531 = vpack.c.b16 %v1499, %v1499
        %v1532 = vpack.c.b16 %v1500, %v1500
        %v1533 = vpack.c.b16 %v1501, %v1501
        %v1534 = vpack.c.b16 %v1502, %v1502
        %v1535 = vpack.c.b16 %v1503, %v1503
        %v1536 = vpack.c.b16 %v1504, %v1504
        %v1537 = vpack.c.b16 %v1505, %v1505
        %v1538 = vpack.c.b16 %v1506, %v1506
        %v1539 = vpack.c.b16 %v1507, %v1507
        %v1540 = vpack.c.b16 %v1508, %v1508
        %v1541 = vpack.c.b16 %v1509, %v1509
        %v1542 = vpack.c.b16 %v1510, %v1510
        %v1543 = vpack.c.b16 %v1511, %v1511
        %v1544 = vpack.c.b16 %v1512, %v1512
        %v1545 = vpack.c.b16 %v1513, %v1513
        %v1546 = vpack.c.b16 %v1514, %v1514
        %v1547 = vpack.c.b16 %v1515, %v1515
        %v1548 = vpack.c.b16 %v1516, %v1516
        %v1549 = vpack.c.b16 %v1517, %v1517
        %v1550 = vpack.c.b16 %v1518, %v1518
        %1583 = vst [vmem:[%s164] sm:$0xf] %v1519
        %1584 = vst [vmem:[%s164 + $0x4] sm:$0xf] %v1520
        %1585 = vst [vmem:[%s164 + $0x8] sm:$0xf] %v1521
        %1586 = vst [vmem:[%s164 + $0xc] sm:$0xf] %v1522
        %1587 = vst [vmem:[%s164 + $0x10] sm:$0xf] %v1523
        %1588 = vst [vmem:[%s164 + $0x14] sm:$0xf] %v1524
        %1589 = vst [vmem:[%s164 + $0x18] sm:$0xf] %v1525
        %1590 = vst [vmem:[%s164 + $0x1c] sm:$0xf] %v1526
        %1591 = vst [vmem:[%s164 + $0x20] sm:$0xf] %v1527
        %1592 = vst [vmem:[%s164 + $0x24] sm:$0xf] %v1528
        %1593 = vst [vmem:[%s164 + $0x28] sm:$0xf] %v1529
        %1594 = vst [vmem:[%s164 + $0x2c] sm:$0xf] %v1530
        %1595 = vst [vmem:[%s164 + $0x30] sm:$0xf] %v1531
        %1596 = vst [vmem:[%s164 + $0x34] sm:$0xf] %v1532
        %1597 = vst [vmem:[%s164 + $0x38] sm:$0xf] %v1533
        %1598 = vst [vmem:[%s164 + $0x3c] sm:$0xf] %v1534
        %1599 = vst [vmem:[%s164 + $0x40] sm:$0xf] %v1535
        %1600 = vst [vmem:[%s164 + $0x44] sm:$0xf] %v1536
        %1601 = vst [vmem:[%s164 + $0x48] sm:$0xf] %v1537
        %1602 = vst [vmem:[%s164 + $0x4c] sm:$0xf] %v1538
        %1603 = vst [vmem:[%s164 + $0x50] sm:$0xf] %v1539
        %1604 = vst [vmem:[%s164 + $0x54] sm:$0xf] %v1540
        %1605 = vst [vmem:[%s164 + $0x58] sm:$0xf] %v1541
        %1606 = vst [vmem:[%s164 + $0x5c] sm:$0xf] %v1542
        %1607 = vst [vmem:[%s164 + $0x60] sm:$0xf] %v1543
        %1608 = vst [vmem:[%s164 + $0x64] sm:$0xf] %v1544
        %1609 = vst [vmem:[%s164 + $0x68] sm:$0xf] %v1545
        %1610 = vst [vmem:[%s164 + $0x6c] sm:$0xf] %v1546
        %1611 = vst [vmem:[%s164 + $0x70] sm:$0xf] %v1547
        %1612 = vst [vmem:[%s164 + $0x74] sm:$0xf] %v1548
        %1613 = vst [vmem:[%s164 + $0x78] sm:$0xf] %v1549
        %1614 = vst [vmem:[%s164 + $0x7c] sm:$0xf] %v1550
        %s1615 = sand.u32 %s93, 1
        %s1616 = scalar_lea.sflag [#allocation3], %s1615
        %s1617 = sand.u32 %s93, 1
        %s1618 = smul.addr %s1617, 128
        %s1619 = scalar_lea.vmem [#allocation2], %s1618
        // Predicated region
        $region33: #{tpu_custom_call.1} parent=31 // pred_check
          %p1620 = pneg %p103
        $region34: #{tpu_custom_call.1} parent=31 // pred_check_branch
          %1622 = sbr.rel (%p1620) target = $region36
        $region35: #{tpu_custom_call.1} parent=31 // pred_region
          %s1623 = smul.u32 32, %s17
          %s1625 = ssub.s32 2048, 2048
          %1626 = vsyncadd %s1616, %s1625
          %s1627 = smul.addr %s1623, 64
          %s1628 = scalar_lea.hbm %s3, %s1627
          %s1629 = sshll.u32 %s1619, 4
          %s1630 = int_to_ptr.vmem [resolvable:$true] %s1629
          %1635 = dma.vmem_to_hbm [thread:$0]  %s1630, 2048, %s1628, %s1616, 64, 64, 4
        $region36: #{tpu_custom_call.1} parent=31 // pred_fallthru
          _
      $region32: #{tpu_custom_call.1} parent=5 // pred_fallthru
        _
      %p1636 = scmp.le.s32.totalorder 2, %s12
      // Predicated region
      $region37: #{tpu_custom_call.1} parent=5 // pred_check
        %p1637 = pneg %p1636
      $region38: #{tpu_custom_call.1} parent=5 // pred_check_branch
        %1639 = sbr.rel (%p1637) target = $region40
      $region39: #{tpu_custom_call.1} parent=5 // pred_region
        %s1640 = ssub.s32 %s12, 2
        // Predicated region
        $region41: #{tpu_custom_call.1} parent=39 // pred_check
          %p1641 = pneg %p109
        $region42: #{tpu_custom_call.1} parent=39 // pred_check_branch
          %1643 = sbr.rel (%p1641) target = $region44
        $region43: #{tpu_custom_call.1} parent=39 // pred_region
          %s1644 = sand.u32 %s94, 1
          %s1645 = scalar_lea.sflag [#allocation3], %s1644
          %s1646 = sand.u32 %s94, 1
          %s1647 = smul.addr %s1646, 128
          %s1648 = scalar_lea.vmem [#allocation2], %s1647
          %1649 = dma.done %s1645, 2048
        $region44: #{tpu_custom_call.1} parent=39 // pred_fallthru
          _
      $region40: #{tpu_custom_call.1} parent=5 // pred_fallthru
        _
    $region6: #{tpu_custom_call.1} parent=1 // loop_footer
      %s16 = sadd.s32 1, %s12
    $region7: #{tpu_custom_call.1} parent=1 // loop_footer_branch
      %11 = sbr.rel target = $region3
    $region8: #{tpu_custom_call.1} parent=1 // loop_exit
      _
    %1650 = vsyncpa [#allocation3], 1
    %s1651 = scalar_lea.sflag [#allocation3], 1
    %1652 = vsyncpa %s1651, 1

</llo_original>
